<compile_context>
chip_gen: v5e
topology: v5e:2x2
jax: 0.10.0
libtpu: 0.0.40
codegen_flags: <defaults>
</compile_context>

<pallas_src>
import math

import jax
import jax.numpy as jnp
from jax.experimental import pallas as pl
from jax.experimental.pallas import tpu as pltpu

IN_DIM = 2
H1, H2, H3 = 12, 64, 128
OUT_DIM = 28 * 28          # 784
OUT_PAD = 896              # 7 * 128: lane-aligned width used for the last matmul


def _round_up(x, m):
    return (x + m - 1) // m * m


def _cdiv(a, b):
    return -(-a // b)


def decoder_kernel(x_ref, w1_ref, b1_ref, w2_ref, b2_ref,
                   w3_ref, b3_ref, w4_ref, b4_ref, o_ref):
    x = x_ref[...]                         # (TB, 2)  f32
    w1 = w1_ref[...]                       # (2, 12)  f32

    # Layer 1 (K=2): two broadcast FMAs on the VPU + ReLU (too small for MXU).
    h = x[:, 0:1] * w1[0:1, :] + x[:, 1:2] * w1[1:2, :] + b1_ref[...]
    h = jnp.maximum(h, 0.0)

    # Layer 2: (TB, 12) @ (12, 64), bf16 MXU, f32 accumulate, bias + ReLU.
    h = jnp.dot(h.astype(jnp.bfloat16), w2_ref[...],
                preferred_element_type=jnp.float32)
    h = jnp.maximum(h + b2_ref[...], 0.0)

    # Layer 3: (TB, 64) @ (64, 128), bf16 MXU, f32 accumulate, bias + ReLU.
    h = jnp.dot(h.astype(jnp.bfloat16), w3_ref[...],
                preferred_element_type=jnp.float32)
    h = jnp.maximum(h + b3_ref[...], 0.0)

    # Layer 4 (dominant FLOPs): (TB, 128) @ (128, 896) bf16 MXU, f32 acc.
    h = jnp.dot(h.astype(jnp.bfloat16), w4_ref[...],
                preferred_element_type=jnp.float32)

    # Drop the zero-padded columns BEFORE bias/tanh/store: only the real 784
    # outputs hit the EUP and HBM.  (The partial last vreg becomes a masked
    # store, hidden under the output DMA.)
    o_ref[...] = jnp.tanh(h[:, :OUT_DIM] + b4_ref[...]).astype(o_ref.dtype)


def decoder_forward(x, params, *, tb_max=1024, out_dtype=jnp.float32):
    """x: (B, 2) f32.  params: (w1,b1,w2,b2,w3,b3,w4,b4); w4 is (128, OUT_PAD)
    bf16 (zero-padded columns), b4 is (1, OUT_DIM) f32.  Returns (B, 784)."""
    w1, b1, w2, b2, w3, b3, w4, b4 = params
    B = x.shape[0]

    # Adaptive batch tile: multiple of 8 sublanes, <= tb_max, minimal tail
    # padding, and >= 2 grid steps when there is enough work (v7x megacore).
    b8 = _round_up(B, 8)
    n_tiles = max(_cdiv(b8, tb_max), 1)
    if n_tiles == 1 and b8 >= 16:
        n_tiles = 2
    tb = _round_up(_cdiv(b8, n_tiles), 8)
    n_tiles = _cdiv(b8, tb)
    b_pad = n_tiles * tb
    if b_pad != B:
        x = jnp.pad(x, ((0, b_pad - B), (0, 0)))
    grid = (n_tiles,)

    def const_spec(a):
        # Full-array block, constant index map -> resident in VMEM across steps.
        return pl.BlockSpec(a.shape, lambda i, _nd=a.ndim: (0,) * _nd)

    out_itemsize = jnp.dtype(out_dtype).itemsize
    flops = 2 * b_pad * (IN_DIM * H1 + H1 * H2 + H2 * H3 + H3 * OUT_PAD)
    bytes_accessed = (b_pad * IN_DIM * 4
                      + b_pad * OUT_DIM * out_itemsize
                      + sum(int(p.size) * p.dtype.itemsize for p in params))

    out = pl.pallas_call(
        decoder_kernel,
        out_shape=jax.ShapeDtypeStruct((b_pad, OUT_DIM), out_dtype),
        grid=grid,
        in_specs=[
            pl.BlockSpec((tb, IN_DIM), lambda i: (i, 0)),
            const_spec(w1), const_spec(b1),
            const_spec(w2), const_spec(b2),
            const_spec(w3), const_spec(b3),
            const_spec(w4), const_spec(b4),
        ],
        out_specs=pl.BlockSpec((tb, OUT_DIM), lambda i: (i, 0)),
        compiler_params=pltpu.CompilerParams(
            dimension_semantics=("parallel",),
            vmem_limit_bytes=48 * 1024 * 1024),
        cost_estimate=pl.CostEstimate(
            flops=flops,
            transcendentals=b_pad * OUT_DIM,
            bytes_accessed=bytes_accessed),
    )(x, w1, b1, w2, b2, w3, b3, w4, b4)

    return out[:B] if b_pad != B else out


def init_linear(key, fan_in, fan_out, *, out_pad=None, w_dtype=jnp.float32):
    """PyTorch nn.Linear init: U(-1/sqrt(fan_in), 1/sqrt(fan_in)).

    Weight is stored as [in, out] (transposed vs. PyTorch) so the kernel does
    x @ W directly.  Optional zero-padding of the weight's output dim to a
    lane-aligned width (the kernel slices the padded columns off before the
    store, so semantics match).  Bias stays unpadded f32."""
    kw, kb = jax.random.split(key)
    bound = 1.0 / math.sqrt(fan_in)
    w = jax.random.uniform(kw, (fan_in, fan_out), jnp.float32, -bound, bound)
    b = jax.random.uniform(kb, (1, fan_out), jnp.float32, -bound, bound)
    if out_pad is not None and out_pad > fan_out:
        w = jnp.pad(w, ((0, 0), (0, out_pad - fan_out)))
    return w.astype(w_dtype), b


def reference_forward(x, params):
    """Pure-JAX reference using the same params / same bf16 matmul precision."""
    w1, b1, w2, b2, w3, b3, w4, b4 = params
    h = jnp.maximum(x[:, 0:1] * w1[0:1, :] + x[:, 1:2] * w1[1:2, :] + b1, 0.0)
    h = jnp.maximum(jnp.dot(h.astype(jnp.bfloat16), w2,
                            preferred_element_type=jnp.float32) + b2, 0.0)
    h = jnp.maximum(jnp.dot(h.astype(jnp.bfloat16), w3,
                            preferred_element_type=jnp.float32) + b3, 0.0)
    h = jnp.dot(h.astype(jnp.bfloat16), w4, preferred_element_type=jnp.float32)
    return jnp.tanh(h[:, :OUT_DIM] + b4)


if __name__ == "__main__":
    key = jax.random.PRNGKey(0)
    k_x, k1, k2, k3, k4 = jax.random.split(key, 5)

    # Decoder input is the 2-dim latent code.  B=200 exercises the adaptive
    # tile (two grid steps of tb=104) and row tail padding (200 -> 208).
    batch = 200
    x = jax.random.normal(k_x, (batch, IN_DIM), jnp.float32)

    params = (
        *init_linear(k1, IN_DIM, H1),                                   # f32
        *init_linear(k2, H1, H2, w_dtype=jnp.bfloat16),
        *init_linear(k3, H2, H3, w_dtype=jnp.bfloat16),
        *init_linear(k4, H3, OUT_DIM, out_pad=OUT_PAD, w_dtype=jnp.bfloat16),
    )

    out = jax.block_until_ready(decoder_forward(x, params))
    ref = reference_forward(x, params)

    assert out.shape == (batch, OUT_DIM), out.shape
    assert bool(jnp.all(jnp.isfinite(out))), "non-finite output"
    assert jnp.allclose(out, ref, atol=5e-3, rtol=5e-3), "mismatch vs reference"

    print("KERNEL_OK")
</pallas_src>

<mosaic_0001>
module attributes {stable_mosaic.version = 11 : i64} {
  func.func @decoder_kernel(%arg0: i32, %arg1: memref<104x2xf32, #tpu.memory_space<vmem>>, %arg2: memref<2x12xf32, #tpu.memory_space<vmem>>, %arg3: memref<1x12xf32, #tpu.memory_space<vmem>>, %arg4: memref<12x64xbf16, #tpu.memory_space<vmem>>, %arg5: memref<1x64xf32, #tpu.memory_space<vmem>>, %arg6: memref<64x128xbf16, #tpu.memory_space<vmem>>, %arg7: memref<1x128xf32, #tpu.memory_space<vmem>>, %arg8: memref<128x896xbf16, #tpu.memory_space<vmem>>, %arg9: memref<1x784xf32, #tpu.memory_space<vmem>>, %arg10: memref<104x784xf32, #tpu.memory_space<vmem>>) attributes {dimension_semantics = [#tpu.dimension_semantics<parallel>], iteration_bounds = array<i64: 2>, scalar_prefetch = 0 : i64, scratch_operands = 0 : i64, tpu.core_type = #tpu.core_type<tc>, window_params = [{transform_indices = @transform_0, window_bounds = array<i64: 104, 2>}, {pipeline_mode = #tpu.pipeline_mode<synchronous>, transform_indices = @transform_1, window_bounds = array<i64: 2, 12>}, {pipeline_mode = #tpu.pipeline_mode<synchronous>, transform_indices = @transform_2, window_bounds = array<i64: 1, 12>}, {pipeline_mode = #tpu.pipeline_mode<synchronous>, transform_indices = @transform_3, window_bounds = array<i64: 12, 64>}, {pipeline_mode = #tpu.pipeline_mode<synchronous>, transform_indices = @transform_4, window_bounds = array<i64: 1, 64>}, {pipeline_mode = #tpu.pipeline_mode<synchronous>, transform_indices = @transform_5, window_bounds = array<i64: 64, 128>}, {pipeline_mode = #tpu.pipeline_mode<synchronous>, transform_indices = @transform_6, window_bounds = array<i64: 1, 128>}, {pipeline_mode = #tpu.pipeline_mode<synchronous>, transform_indices = @transform_7, window_bounds = array<i64: 128, 896>}, {pipeline_mode = #tpu.pipeline_mode<synchronous>, transform_indices = @transform_8, window_bounds = array<i64: 1, 784>}, {transform_indices = @transform_9, window_bounds = array<i64: 104, 784>}]} {
    %c0 = arith.constant 0 : index
    %c0_0 = arith.constant 0 : index
    %0 = vector.load %arg1[%c0, %c0_0] : memref<104x2xf32, #tpu.memory_space<vmem>>, vector<104x2xf32>
    %c0_1 = arith.constant 0 : index
    %c0_2 = arith.constant 0 : index
    %1 = vector.load %arg2[%c0_1, %c0_2] : memref<2x12xf32, #tpu.memory_space<vmem>>, vector<2x12xf32>
    %2 = vector.extract_strided_slice %0 {offsets = [0, 0], sizes = [104, 1], strides = [1, 1]} : vector<104x2xf32> to vector<104x1xf32>
    %3 = vector.extract_strided_slice %1 {offsets = [0, 0], sizes = [1, 12], strides = [1, 1]} : vector<2x12xf32> to vector<1x12xf32>
    %4 = vector.broadcast %2 : vector<104x1xf32> to vector<104x12xf32>
    %5 = vector.broadcast %3 : vector<1x12xf32> to vector<104x12xf32>
    %6 = arith.mulf %4, %5 : vector<104x12xf32>
    %7 = vector.extract_strided_slice %0 {offsets = [0, 1], sizes = [104, 1], strides = [1, 1]} : vector<104x2xf32> to vector<104x1xf32>
    %8 = vector.extract_strided_slice %1 {offsets = [1, 0], sizes = [1, 12], strides = [1, 1]} : vector<2x12xf32> to vector<1x12xf32>
    %9 = vector.broadcast %7 : vector<104x1xf32> to vector<104x12xf32>
    %10 = vector.broadcast %8 : vector<1x12xf32> to vector<104x12xf32>
    %11 = arith.mulf %9, %10 : vector<104x12xf32>
    %12 = arith.addf %6, %11 : vector<104x12xf32>
    %c0_3 = arith.constant 0 : index
    %c0_4 = arith.constant 0 : index
    %13 = vector.load %arg3[%c0_3, %c0_4] : memref<1x12xf32, #tpu.memory_space<vmem>>, vector<1x12xf32>
    %14 = vector.broadcast %13 : vector<1x12xf32> to vector<104x12xf32>
    %15 = arith.addf %12, %14 : vector<104x12xf32>
    %cst = arith.constant 0.000000e+00 : f32
    %16 = vector.broadcast %cst : f32 to vector<104x12xf32>
    %17 = arith.maximumf %15, %16 : vector<104x12xf32>
    %18 = arith.truncf %17 : vector<104x12xf32> to vector<104x12xbf16>
    %c0_5 = arith.constant 0 : index
    %c0_6 = arith.constant 0 : index
    %19 = vector.load %arg4[%c0_5, %c0_6] : memref<12x64xbf16, #tpu.memory_space<vmem>>, vector<12x64xbf16>
    %cst_7 = arith.constant dense<0.000000e+00> : vector<104x64xf32>
    %20 = tpu.matmul %18, %19, %cst_7 {dimension_numbers = #tpu.dot_dimension_numbers<[1], [0], [0], [1], [0, 0, 1, 1], [], []>} : vector<104x12xbf16>, vector<12x64xbf16>, vector<104x64xf32> -> vector<104x64xf32>
    %c0_8 = arith.constant 0 : index
    %c0_9 = arith.constant 0 : index
    %21 = vector.load %arg5[%c0_8, %c0_9] : memref<1x64xf32, #tpu.memory_space<vmem>>, vector<1x64xf32>
    %22 = vector.broadcast %21 : vector<1x64xf32> to vector<104x64xf32>
    %23 = arith.addf %20, %22 : vector<104x64xf32>
    %cst_10 = arith.constant 0.000000e+00 : f32
    %24 = vector.broadcast %cst_10 : f32 to vector<104x64xf32>
    %25 = arith.maximumf %23, %24 : vector<104x64xf32>
    %26 = arith.truncf %25 : vector<104x64xf32> to vector<104x64xbf16>
    %c0_11 = arith.constant 0 : index
    %c0_12 = arith.constant 0 : index
    %27 = vector.load %arg6[%c0_11, %c0_12] : memref<64x128xbf16, #tpu.memory_space<vmem>>, vector<64x128xbf16>
    %cst_13 = arith.constant dense<0.000000e+00> : vector<104x128xf32>
    %28 = tpu.matmul %26, %27, %cst_13 {dimension_numbers = #tpu.dot_dimension_numbers<[1], [0], [0], [1], [0, 0, 1, 1], [], []>} : vector<104x64xbf16>, vector<64x128xbf16>, vector<104x128xf32> -> vector<104x128xf32>
    %c0_14 = arith.constant 0 : index
    %c0_15 = arith.constant 0 : index
    %29 = vector.load %arg7[%c0_14, %c0_15] : memref<1x128xf32, #tpu.memory_space<vmem>>, vector<1x128xf32>
    %30 = vector.broadcast %29 : vector<1x128xf32> to vector<104x128xf32>
    %31 = arith.addf %28, %30 : vector<104x128xf32>
    %cst_16 = arith.constant 0.000000e+00 : f32
    %32 = vector.broadcast %cst_16 : f32 to vector<104x128xf32>
    %33 = arith.maximumf %31, %32 : vector<104x128xf32>
    %34 = arith.truncf %33 : vector<104x128xf32> to vector<104x128xbf16>
    %c0_17 = arith.constant 0 : index
    %c0_18 = arith.constant 0 : index
    %35 = vector.load %arg8[%c0_17, %c0_18] : memref<128x896xbf16, #tpu.memory_space<vmem>>, vector<128x896xbf16>
    %cst_19 = arith.constant dense<0.000000e+00> : vector<104x896xf32>
    %36 = tpu.matmul %34, %35, %cst_19 {dimension_numbers = #tpu.dot_dimension_numbers<[1], [0], [0], [1], [0, 0, 1, 1], [], []>} : vector<104x128xbf16>, vector<128x896xbf16>, vector<104x896xf32> -> vector<104x896xf32>
    %37 = vector.extract_strided_slice %36 {offsets = [0, 0], sizes = [104, 784], strides = [1, 1]} : vector<104x896xf32> to vector<104x784xf32>
    %c0_20 = arith.constant 0 : index
    %c0_21 = arith.constant 0 : index
    %38 = vector.load %arg9[%c0_20, %c0_21] : memref<1x784xf32, #tpu.memory_space<vmem>>, vector<1x784xf32>
    %39 = vector.broadcast %38 : vector<1x784xf32> to vector<104x784xf32>
    %40 = arith.addf %37, %39 : vector<104x784xf32>
    %41 = math.tanh %40 : vector<104x784xf32>
    %c0_22 = arith.constant 0 : index
    %c0_23 = arith.constant 0 : index
    %42 = vector.load %arg10[%c0_22, %c0_23] : memref<104x784xf32, #tpu.memory_space<vmem>>, vector<104x784xf32>
    tpu.vector_store %arg10[%c0_22, %c0_23], %41 {strides = array<i32>} : memref<104x784xf32, #tpu.memory_space<vmem>>, vector<104x784xf32>,
    return
  }
  func.func @transform_0(%arg0: i32) -> (i32, i32) {
    %c0_i32 = arith.constant 0 : i32
    %c0_i32_0 = arith.constant 0 : i32
    return %arg0, %c0_i32 : i32, i32
  }
  func.func @transform_1(%arg0: i32) -> (i32, i32) {
    %c0_i32 = arith.constant 0 : i32
    %c0_i32_0 = arith.constant 0 : i32
    %c0_i32_1 = arith.constant 0 : i32
    return %c0_i32, %c0_i32_0 : i32, i32
  }
  func.func @transform_2(%arg0: i32) -> (i32, i32) {
    %c0_i32 = arith.constant 0 : i32
    %c0_i32_0 = arith.constant 0 : i32
    %c0_i32_1 = arith.constant 0 : i32
    return %c0_i32, %c0_i32_0 : i32, i32
  }
  func.func @transform_3(%arg0: i32) -> (i32, i32) {
    %c0_i32 = arith.constant 0 : i32
    %c0_i32_0 = arith.constant 0 : i32
    %c0_i32_1 = arith.constant 0 : i32
    return %c0_i32, %c0_i32_0 : i32, i32
  }
  func.func @transform_4(%arg0: i32) -> (i32, i32) {
    %c0_i32 = arith.constant 0 : i32
    %c0_i32_0 = arith.constant 0 : i32
    %c0_i32_1 = arith.constant 0 : i32
    return %c0_i32, %c0_i32_0 : i32, i32
  }
  func.func @transform_5(%arg0: i32) -> (i32, i32) {
    %c0_i32 = arith.constant 0 : i32
    %c0_i32_0 = arith.constant 0 : i32
    %c0_i32_1 = arith.constant 0 : i32
    return %c0_i32, %c0_i32_0 : i32, i32
  }
  func.func @transform_6(%arg0: i32) -> (i32, i32) {
    %c0_i32 = arith.constant 0 : i32
    %c0_i32_0 = arith.constant 0 : i32
    %c0_i32_1 = arith.constant 0 : i32
    return %c0_i32, %c0_i32_0 : i32, i32
  }
  func.func @transform_7(%arg0: i32) -> (i32, i32) {
    %c0_i32 = arith.constant 0 : i32
    %c0_i32_0 = arith.constant 0 : i32
    %c0_i32_1 = arith.constant 0 : i32
    return %c0_i32, %c0_i32_0 : i32, i32
  }
  func.func @transform_8(%arg0: i32) -> (i32, i32) {
    %c0_i32 = arith.constant 0 : i32
    %c0_i32_0 = arith.constant 0 : i32
    %c0_i32_1 = arith.constant 0 : i32
    return %c0_i32, %c0_i32_0 : i32, i32
  }
  func.func @transform_9(%arg0: i32) -> (i32, i32) {
    %c0_i32 = arith.constant 0 : i32
    %c0_i32_0 = arith.constant 0 : i32
    return %arg0, %c0_i32 : i32, i32
  }
}

</mosaic_0001>

<llo_original>
// kernel: tpu_custom_call.1
$region0: #{tpu_custom_call.1}
  #allocation0 [shape = 'u32[]', space=smem, size = 0x4, offset = 0x4, fixed_abs, tag = 'smem constant byte address 0x4 - core index']
  #allocation1 [shape = 'u32[72,128]{1,0:T(1,128)}', space=vmem, size = 0x9000, scoped, tag = 'internal scratch']
  %s0 = inlined_call_operand.vmem [shape: f32[208,2], index: 0, kind: input, shape index: {}]
  %s1 = inlined_call_operand.vmem [shape: f32[2,12], index: 1, kind: input, shape index: {}]
  %s2 = inlined_call_operand.vmem [shape: f32[1,12], index: 2, kind: input, shape index: {}]
  %s3 = inlined_call_operand.vmem [shape: bf16[12,64], index: 3, kind: input, shape index: {}]
  %s4 = inlined_call_operand.vmem [shape: f32[1,64], index: 4, kind: input, shape index: {}]
  %s5 = inlined_call_operand.vmem [shape: bf16[64,128], index: 5, kind: input, shape index: {}]
  %s6 = inlined_call_operand.vmem [shape: f32[1,128], index: 6, kind: input, shape index: {}]
  %s7 = inlined_call_operand.hbm [shape: bf16[128,896], index: 7, kind: input, shape index: {}]
  %s8 = inlined_call_operand.vmem [shape: f32[1,784], index: 8, kind: input, shape index: {}]
  %s9 = inlined_call_operand.hbm [shape: f32[208,784], index: 9, kind: output, shape index: {}]
  %s10 = sld [smem:[#allocation0]]
  $region73: #{tpu_custom_call.1} parent=0
    _
  %s12 = ssub.s32 1, %s10
  %s13 = scalar_select 0, %s12, %s10
  $region1: #{tpu_custom_call.1} parent=0
    #allocation2 [shape = 'u8[229376]{0}', space=vmem, size = 0x38000, scoped, tag = 'input window, operand 7, single buffered']
    #allocation3 [shape = 's32[2]{0}', space=sflag, size = 0x8, scoped, tag = 'scoped memory for tpu_custom_call.1']
    #allocation4 [shape = 's32[2]{0}', space=sflag, size = 0x8, scoped, tag = 'scoped memory for tpu_custom_call.1']
    #allocation5 [shape = 'u8[745472]{0}', space=vmem, size = 0xb6000, scoped, tag = 'output window, operand 0']
    %14 = vsyncpa [#allocation3], 0
    %15 = vsyncpa [#allocation4], 0
    %s16 = scalar_lea.sflag [#allocation4], 1
    %17 = vsyncpa %s16, 0
    loop: start=0, step=1, limit=4
    $region2: #{tpu_custom_call.1} parent=1 // loop_pre_header
      _
    $region3: #{tpu_custom_call.1} parent=1 // loop_header
      %s19 = sphi 0, %s23
      %p20 = scmp.ge.s32.totalorder %s19, 4
      %s29 = sphi 0, %s31
      %s32 = sphi 0, %s29
      %s33 = sphi 0, %s32
      %s49 = sphi 0, %s33
      %s53 = sphi 0, %s53
      %s55 = sphi 0, %s53
      %s56 = sphi 0, %s55
      %s70 = sphi 0, %s56
      %s74 = sphi 0, %s74
      %s76 = sphi 0, %s74
      %s77 = sphi 0, %s76
      %s91 = sphi 0, %s77
      %s95 = sphi 0, %s95
      %s97 = sphi 0, %s95
      %s98 = sphi 0, %s97
      %s112 = sphi 0, %s98
      %s116 = sphi 0, %s116
      %s118 = sphi 0, %s116
      %s119 = sphi 0, %s118
      %s133 = sphi 0, %s119
      %s137 = sphi 0, %s137
      %s139 = sphi 0, %s137
      %s140 = sphi 0, %s139
      %s154 = sphi 0, %s140
      %s158 = sphi 0, %s158
      %s160 = sphi 0, %s158
      %s161 = sphi 0, %s160
      %s175 = sphi 0, %s161
      %s179 = sphi 0, %s179
      %s181 = sphi 0, %s179
      %s182 = sphi 0, %s181
      %s196 = sphi 0, %s182
      %s200 = sphi 0, %s200
      %s202 = sphi 0, %s200
      %s203 = sphi 0, %s202
      %s217 = sphi 0, %s203
      %s223 = sphi 0, %s225
      %s226 = sphi 0, %s223
      %s227 = sphi 0, %s226
      %s243 = sphi 0, %s227
    $region4: #{tpu_custom_call.1} parent=1 // loop_header_branch
      %22 = sbr.rel (%p20) target = $region8
    $region5: #{tpu_custom_call.1} parent=1 // loop_body
      %s24 = ssub.s32 %s19, 1
      %s25 = ssub.s32 %s19, 2
      %s26 = sadd.s32 %s19, 1
      %s27 = ssub.s32 %s19, %s26
      %p28 = scmp.eq.s32.totalorder %s27, 0
      %s30 = sadd.s32 %s29, 1
      %s31 = scalar_select %p28, %s29, %s30
      %p34 = pneg %p28
      %p35 = scmp.eq.s32.totalorder %s19, 1
      %p36 = por %p34, %p35
      %p37 = scmp.ne.s32.totalorder %s29, %s32
      %p38 = scmp.eq.s32.totalorder %s19, 0
      %p39 = por %p37, %p38
      %p40 = scmp.ne.s32.totalorder %s29, %s32
      %p41 = scmp.eq.s32.totalorder %s24, 1
      %p42 = por %p40, %p41
      %p43 = scmp.ne.s32.totalorder %s32, %s33
      %p44 = scmp.eq.s32.totalorder %s24, 0
      %p45 = por %p43, %p44
      %p46 = scmp.ne.s32.totalorder %s32, %s33
      %p47 = scmp.eq.s32.totalorder %s25, 1
      %p48 = por %p46, %p47
      %p50 = scmp.ne.s32.totalorder %s33, %s49
      %p51 = scmp.eq.s32.totalorder %s25, 0
      %p52 = por %p50, %p51
      %s54 = sadd.s32 %s53, 1
      %p57 = scmp.eq.s32.totalorder %s19, 1
      %p58 = scmp.ne.s32.totalorder %s53, %s55
      %p59 = scmp.eq.s32.totalorder %s19, 0
      %p60 = por %p58, %p59
      %p61 = scmp.ne.s32.totalorder %s53, %s55
      %p62 = scmp.eq.s32.totalorder %s24, 1
      %p63 = por %p61, %p62
      %p64 = scmp.ne.s32.totalorder %s55, %s56
      %p65 = scmp.eq.s32.totalorder %s24, 0
      %p66 = por %p64, %p65
      %p67 = scmp.ne.s32.totalorder %s55, %s56
      %p68 = scmp.eq.s32.totalorder %s25, 1
      %p69 = por %p67, %p68
      %p71 = scmp.ne.s32.totalorder %s56, %s70
      %p72 = scmp.eq.s32.totalorder %s25, 0
      %p73 = por %p71, %p72
      %s75 = sadd.s32 %s74, 1
      %p78 = scmp.eq.s32.totalorder %s19, 1
      %p79 = scmp.ne.s32.totalorder %s74, %s76
      %p80 = scmp.eq.s32.totalorder %s19, 0
      %p81 = por %p79, %p80
      %p82 = scmp.ne.s32.totalorder %s74, %s76
      %p83 = scmp.eq.s32.totalorder %s24, 1
      %p84 = por %p82, %p83
      %p85 = scmp.ne.s32.totalorder %s76, %s77
      %p86 = scmp.eq.s32.totalorder %s24, 0
      %p87 = por %p85, %p86
      %p88 = scmp.ne.s32.totalorder %s76, %s77
      %p89 = scmp.eq.s32.totalorder %s25, 1
      %p90 = por %p88, %p89
      %p92 = scmp.ne.s32.totalorder %s77, %s91
      %p93 = scmp.eq.s32.totalorder %s25, 0
      %p94 = por %p92, %p93
      %s96 = sadd.s32 %s95, 1
      %p99 = scmp.eq.s32.totalorder %s19, 1
      %p100 = scmp.ne.s32.totalorder %s95, %s97
      %p101 = scmp.eq.s32.totalorder %s19, 0
      %p102 = por %p100, %p101
      %p103 = scmp.ne.s32.totalorder %s95, %s97
      %p104 = scmp.eq.s32.totalorder %s24, 1
      %p105 = por %p103, %p104
      %p106 = scmp.ne.s32.totalorder %s97, %s98
      %p107 = scmp.eq.s32.totalorder %s24, 0
      %p108 = por %p106, %p107
      %p109 = scmp.ne.s32.totalorder %s97, %s98
      %p110 = scmp.eq.s32.totalorder %s25, 1
      %p111 = por %p109, %p110
      %p113 = scmp.ne.s32.totalorder %s98, %s112
      %p114 = scmp.eq.s32.totalorder %s25, 0
      %p115 = por %p113, %p114
      %s117 = sadd.s32 %s116, 1
      %p120 = scmp.eq.s32.totalorder %s19, 1
      %p121 = scmp.ne.s32.totalorder %s116, %s118
      %p122 = scmp.eq.s32.totalorder %s19, 0
      %p123 = por %p121, %p122
      %p124 = scmp.ne.s32.totalorder %s116, %s118
      %p125 = scmp.eq.s32.totalorder %s24, 1
      %p126 = por %p124, %p125
      %p127 = scmp.ne.s32.totalorder %s118, %s119
      %p128 = scmp.eq.s32.totalorder %s24, 0
      %p129 = por %p127, %p128
      %p130 = scmp.ne.s32.totalorder %s118, %s119
      %p131 = scmp.eq.s32.totalorder %s25, 1
      %p132 = por %p130, %p131
      %p134 = scmp.ne.s32.totalorder %s119, %s133
      %p135 = scmp.eq.s32.totalorder %s25, 0
      %p136 = por %p134, %p135
      %s138 = sadd.s32 %s137, 1
      %p141 = scmp.eq.s32.totalorder %s19, 1
      %p142 = scmp.ne.s32.totalorder %s137, %s139
      %p143 = scmp.eq.s32.totalorder %s19, 0
      %p144 = por %p142, %p143
      %p145 = scmp.ne.s32.totalorder %s137, %s139
      %p146 = scmp.eq.s32.totalorder %s24, 1
      %p147 = por %p145, %p146
      %p148 = scmp.ne.s32.totalorder %s139, %s140
      %p149 = scmp.eq.s32.totalorder %s24, 0
      %p150 = por %p148, %p149
      %p151 = scmp.ne.s32.totalorder %s139, %s140
      %p152 = scmp.eq.s32.totalorder %s25, 1
      %p153 = por %p151, %p152
      %p155 = scmp.ne.s32.totalorder %s140, %s154
      %p156 = scmp.eq.s32.totalorder %s25, 0
      %p157 = por %p155, %p156
      %s159 = sadd.s32 %s158, 1
      %p162 = scmp.eq.s32.totalorder %s19, 1
      %p163 = scmp.ne.s32.totalorder %s158, %s160
      %p164 = scmp.eq.s32.totalorder %s19, 0
      %p165 = por %p163, %p164
      %p166 = scmp.ne.s32.totalorder %s158, %s160
      %p167 = scmp.eq.s32.totalorder %s24, 1
      %p168 = por %p166, %p167
      %p169 = scmp.ne.s32.totalorder %s160, %s161
      %p170 = scmp.eq.s32.totalorder %s24, 0
      %p171 = por %p169, %p170
      %p172 = scmp.ne.s32.totalorder %s160, %s161
      %p173 = scmp.eq.s32.totalorder %s25, 1
      %p174 = por %p172, %p173
      %p176 = scmp.ne.s32.totalorder %s161, %s175
      %p177 = scmp.eq.s32.totalorder %s25, 0
      %p178 = por %p176, %p177
      %s180 = sadd.s32 %s179, 1
      %p183 = scmp.eq.s32.totalorder %s19, 1
      %p184 = scmp.ne.s32.totalorder %s179, %s181
      %p185 = scmp.eq.s32.totalorder %s19, 0
      %p186 = por %p184, %p185
      %p187 = scmp.ne.s32.totalorder %s179, %s181
      %p188 = scmp.eq.s32.totalorder %s24, 1
      %p189 = por %p187, %p188
      %p190 = scmp.ne.s32.totalorder %s181, %s182
      %p191 = scmp.eq.s32.totalorder %s24, 0
      %p192 = por %p190, %p191
      %p193 = scmp.ne.s32.totalorder %s181, %s182
      %p194 = scmp.eq.s32.totalorder %s25, 1
      %p195 = por %p193, %p194
      %p197 = scmp.ne.s32.totalorder %s182, %s196
      %p198 = scmp.eq.s32.totalorder %s25, 0
      %p199 = por %p197, %p198
      %s201 = sadd.s32 %s200, 1
      %p204 = scmp.eq.s32.totalorder %s19, 1
      %p205 = scmp.ne.s32.totalorder %s200, %s202
      %p206 = scmp.eq.s32.totalorder %s19, 0
      %p207 = por %p205, %p206
      %p208 = scmp.ne.s32.totalorder %s200, %s202
      %p209 = scmp.eq.s32.totalorder %s24, 1
      %p210 = por %p208, %p209
      %p211 = scmp.ne.s32.totalorder %s202, %s203
      %p212 = scmp.eq.s32.totalorder %s24, 0
      %p213 = por %p211, %p212
      %p214 = scmp.ne.s32.totalorder %s202, %s203
      %p215 = scmp.eq.s32.totalorder %s25, 1
      %p216 = por %p214, %p215
      %p218 = scmp.ne.s32.totalorder %s203, %s217
      %p219 = scmp.eq.s32.totalorder %s25, 0
      %p220 = por %p218, %p219
      %s221 = ssub.s32 %s19, %s26
      %p222 = scmp.eq.s32.totalorder %s221, 0
      %s224 = sadd.s32 %s223, 1
      %s225 = scalar_select %p222, %s223, %s224
      %p228 = pneg %p222
      %p229 = scmp.eq.s32.totalorder %s19, 1
      %p230 = por %p228, %p229
      %p231 = scmp.ne.s32.totalorder %s223, %s226
      %p232 = scmp.eq.s32.totalorder %s19, 0
      %p233 = por %p231, %p232
      %p234 = scmp.ne.s32.totalorder %s223, %s226
      %p235 = scmp.eq.s32.totalorder %s24, 1
      %p236 = por %p234, %p235
      %p237 = scmp.ne.s32.totalorder %s226, %s227
      %p238 = scmp.eq.s32.totalorder %s24, 0
      %p239 = por %p237, %p238
      %p240 = scmp.ne.s32.totalorder %s226, %s227
      %p241 = scmp.eq.s32.totalorder %s25, 1
      %p242 = por %p240, %p241
      %p244 = scmp.ne.s32.totalorder %s227, %s243
      %p245 = scmp.eq.s32.totalorder %s25, 0
      %p246 = por %p244, %p245
      %p247 = scmp.le.s32.totalorder 1, %s19
      %p248 = scmp.lt.s32.totalorder %s19, 3
      %p249 = pnand %p247, %p248
      %p250 = pneg %p249
      // Predicated region
      $region9: #{tpu_custom_call.1} parent=5 // pred_check
        _
      $region10: #{tpu_custom_call.1} parent=5 // pred_check_branch
        %252 = sbr.rel (%p249) target = $region12
      $region11: #{tpu_custom_call.1} parent=5 // pred_region
        %s253 = ssub.s32 %s19, 1
        // Predicated region
        $region13: #{tpu_custom_call.1} parent=11 // pred_check
          %p254 = pneg %p66
        $region14: #{tpu_custom_call.1} parent=11 // pred_check_branch
          %256 = sbr.rel (%p254) target = $region16
        $region15: #{tpu_custom_call.1} parent=11 // pred_region
          _
        $region16: #{tpu_custom_call.1} parent=11 // pred_fallthru
          _
        // Predicated region
        $region17: #{tpu_custom_call.1} parent=11 // pred_check
          %p257 = pneg %p87
        $region18: #{tpu_custom_call.1} parent=11 // pred_check_branch
          %259 = sbr.rel (%p257) target = $region20
        $region19: #{tpu_custom_call.1} parent=11 // pred_region
          _
        $region20: #{tpu_custom_call.1} parent=11 // pred_fallthru
          _
        // Predicated region
        $region21: #{tpu_custom_call.1} parent=11 // pred_check
          %p260 = pneg %p108
        $region22: #{tpu_custom_call.1} parent=11 // pred_check_branch
          %262 = sbr.rel (%p260) target = $region24
        $region23: #{tpu_custom_call.1} parent=11 // pred_region
          _
        $region24: #{tpu_custom_call.1} parent=11 // pred_fallthru
          _
        // Predicated region
        $region25: #{tpu_custom_call.1} parent=11 // pred_check
          %p263 = pneg %p129
        $region26: #{tpu_custom_call.1} parent=11 // pred_check_branch
          %265 = sbr.rel (%p263) target = $region28
        $region27: #{tpu_custom_call.1} parent=11 // pred_region
          _
        $region28: #{tpu_custom_call.1} parent=11 // pred_fallthru
          _
        // Predicated region
        $region29: #{tpu_custom_call.1} parent=11 // pred_check
          %p266 = pneg %p150
        $region30: #{tpu_custom_call.1} parent=11 // pred_check_branch
          %268 = sbr.rel (%p266) target = $region32
        $region31: #{tpu_custom_call.1} parent=11 // pred_region
          _
        $region32: #{tpu_custom_call.1} parent=11 // pred_fallthru
          _
        // Predicated region
        $region33: #{tpu_custom_call.1} parent=11 // pred_check
          %p269 = pneg %p171
        $region34: #{tpu_custom_call.1} parent=11 // pred_check_branch
          %271 = sbr.rel (%p269) target = $region36
        $region35: #{tpu_custom_call.1} parent=11 // pred_region
          _
        $region36: #{tpu_custom_call.1} parent=11 // pred_fallthru
          _
        // Predicated region
        $region37: #{tpu_custom_call.1} parent=11 // pred_check
          %p272 = pneg %p192
        $region38: #{tpu_custom_call.1} parent=11 // pred_check_branch
          %274 = sbr.rel (%p272) target = $region40
        $region39: #{tpu_custom_call.1} parent=11 // pred_region
          %276 = vsyncadd [#allocation3], 0
          %s277 = sshll.u32 %s7, 4
          %s278 = int_to_ptr.hbm [resolvable:$true] %s277
          %s279 = sshll.u32 [#allocation2], 4
          %s280 = int_to_ptr.vmem [resolvable:$true] %s279
          %285 = dma.hbm_to_vmem [thread:$0]  %s278, 7168, %s280, [#allocation3], 448, 448, 28
        $region40: #{tpu_custom_call.1} parent=11 // pred_fallthru
          _
        // Predicated region
        $region41: #{tpu_custom_call.1} parent=11 // pred_check
          %p286 = pneg %p213
        $region42: #{tpu_custom_call.1} parent=11 // pred_check_branch
          %288 = sbr.rel (%p286) target = $region44
        $region43: #{tpu_custom_call.1} parent=11 // pred_region
          _
        $region44: #{tpu_custom_call.1} parent=11 // pred_fallthru
          _
      $region12: #{tpu_custom_call.1} parent=5 // pred_fallthru
        _
      %p289 = scmp.lt.s32.totalorder %s19, 2
      // Predicated region
      $region45: #{tpu_custom_call.1} parent=5 // pred_check
        %p290 = pneg %p289
      $region46: #{tpu_custom_call.1} parent=5 // pred_check_branch
        %292 = sbr.rel (%p290) target = $region48
      $region47: #{tpu_custom_call.1} parent=5 // pred_region
        // Predicated region
        $region49: #{tpu_custom_call.1} parent=47 // pred_check
          %p293 = pneg %p39
        $region50: #{tpu_custom_call.1} parent=47 // pred_check_branch
          %295 = sbr.rel (%p293) target = $region52
        $region51: #{tpu_custom_call.1} parent=47 // pred_region
          %s296 = smul.u32 13, %s19
          %p297 = scmp.lt.s32.totalorder %s296, 25
          %s298 = scalar_select %p297, %s296, 25
          %s299 = smul.addr %s298, 8
          %s300 = scalar_lea.vmem %s0, %s299
          %s301 = smul.u32 13, %s19
        $region52: #{tpu_custom_call.1} parent=47 // pred_fallthru
          _
      $region48: #{tpu_custom_call.1} parent=5 // pred_fallthru
        _
      %p302 = scmp.le.s32.totalorder 1, %s19
      %p303 = scmp.lt.s32.totalorder %s19, 3
      %p304 = pnand %p302, %p303
      %p305 = pneg %p304
      // Predicated region
      $region53: #{tpu_custom_call.1} parent=5 // pred_check
        _
      $region54: #{tpu_custom_call.1} parent=5 // pred_check_branch
        %307 = sbr.rel (%p304) target = $region56
      $region55: #{tpu_custom_call.1} parent=5 // pred_region
        %s308 = ssub.s32 %s19, 1
        // Predicated region
        $region57: #{tpu_custom_call.1} parent=55 // pred_check
          %p309 = pneg %p192
        $region58: #{tpu_custom_call.1} parent=55 // pred_check_branch
          %311 = sbr.rel (%p309) target = $region60
        $region59: #{tpu_custom_call.1} parent=55 // pred_region
          %313 = dma.done [#allocation3], 7168
        $region60: #{tpu_custom_call.1} parent=55 // pred_fallthru
          _
        %s314 = smul.u32 13, %s24
        %p315 = scmp.lt.s32.totalorder %s314, 25
        %s316 = scalar_select %p315, %s314, 25
        %s317 = smul.addr %s316, 8
        %s318 = scalar_lea.vmem %s0, %s317
        %p319 = pneg %p45
        %p320 = pneg %p42
        %p321 = pneg %p66
        %p322 = pneg %p63
        %p323 = pneg %p87
        %p324 = pneg %p84
        %p325 = pneg %p108
        %p326 = pneg %p105
        %p327 = pneg %p129
        %p328 = pneg %p126
        %p329 = pneg %p150
        %p330 = pneg %p147
        %p331 = pneg %p171
        %p332 = pneg %p168
        %p333 = pneg %p192
        %p334 = pneg %p189
        %p335 = pneg %p213
        %p336 = pneg %p210
        %p337 = pneg %p239
        %p338 = pneg %p236
        %s339 = sand.u32 %s226, 1
        %s340 = scalar_lea.sflag [#allocation4], %s339
        %s341 = sand.u32 %s226, 1
        %s342 = smul.addr %s341, 728
        %s343 = scalar_lea.vmem [#allocation5], %s342
        %s344 = smul.u32 13, %s24
        %p345 = scmp.lt.s32.totalorder %s344, 25
        %s346 = scalar_select %p345, %s344, 25
        %s347 = smul.addr %s346, 8
        %s348 = scalar_lea.vmem %s0, %s347
        %s349 = smul.u32 13, %s24
        %s350 = smul.u32 13, %s24
        %v352 = vld [vmem:[%s348] sm:$0xff]
        %v353 = vld [vmem:[%s348 + $0x8] sm:$0xff]
        %v354 = vld [vmem:[%s348 + $0x10] sm:$0xff]
        %v355 = vld [vmem:[%s348 + $0x18] sm:$0xff]
        %v356 = vld [vmem:[%s348 + $0x20] sm:$0xff]
        %v357 = vld [vmem:[%s348 + $0x28] sm:$0xff]
        %v358 = vld [vmem:[%s348 + $0x30] sm:$0xff]
        %v359 = vld [vmem:[%s348 + $0x38] sm:$0xff]
        %v360 = vld [vmem:[%s348 + $0x40] sm:$0xff]
        %v361 = vld [vmem:[%s348 + $0x48] sm:$0xff]
        %v362 = vld [vmem:[%s348 + $0x50] sm:$0xff]
        %v363 = vld [vmem:[%s348 + $0x58] sm:$0xff]
        %v364 = vld [vmem:[%s348 + $0x60] sm:$0xff]
        %v365 = vld [vmem:[%s1] sm:$0x3]
        %367 = vset.pattern.permute.xlu0 0
        %368 = vperm.xlu0 %367, %v352
        %v369 = vpop.permute.xlu0 %368
        %372 = vset.pattern.permute.xlu0 0
        %373 = vperm.xlu0 %372, %v353
        %v374 = vpop.permute.xlu0 %373
        %377 = vset.pattern.permute.xlu0 0
        %378 = vperm.xlu0 %377, %v354
        %v379 = vpop.permute.xlu0 %378
        %382 = vset.pattern.permute.xlu0 0
        %383 = vperm.xlu0 %382, %v355
        %v384 = vpop.permute.xlu0 %383
        %387 = vset.pattern.permute.xlu0 0
        %388 = vperm.xlu0 %387, %v356
        %v389 = vpop.permute.xlu0 %388
        %392 = vset.pattern.permute.xlu0 0
        %393 = vperm.xlu0 %392, %v357
        %v394 = vpop.permute.xlu0 %393
        %397 = vset.pattern.permute.xlu0 0
        %398 = vperm.xlu0 %397, %v358
        %v399 = vpop.permute.xlu0 %398
        %402 = vset.pattern.permute.xlu0 0
        %403 = vperm.xlu0 %402, %v359
        %v404 = vpop.permute.xlu0 %403
        %407 = vset.pattern.permute.xlu0 0
        %408 = vperm.xlu0 %407, %v360
        %v409 = vpop.permute.xlu0 %408
        %412 = vset.pattern.permute.xlu0 0
        %413 = vperm.xlu0 %412, %v361
        %v414 = vpop.permute.xlu0 %413
        %417 = vset.pattern.permute.xlu0 0
        %418 = vperm.xlu0 %417, %v362
        %v419 = vpop.permute.xlu0 %418
        %422 = vset.pattern.permute.xlu0 0
        %423 = vperm.xlu0 %422, %v363
        %v424 = vpop.permute.xlu0 %423
        %427 = vset.pattern.permute.xlu0 0
        %428 = vperm.xlu0 %427, %v364
        %v429 = vpop.permute.xlu0 %428
        %v431 = vperm.slane %v365, 0
        %v432 = vmul.f32 %v369, %v431
        %v433 = vmul.f32 %v374, %v431
        %v434 = vmul.f32 %v379, %v431
        %v435 = vmul.f32 %v384, %v431
        %v436 = vmul.f32 %v389, %v431
        %v437 = vmul.f32 %v394, %v431
        %v438 = vmul.f32 %v399, %v431
        %v439 = vmul.f32 %v404, %v431
        %v440 = vmul.f32 %v409, %v431
        %v441 = vmul.f32 %v414, %v431
        %v442 = vmul.f32 %v419, %v431
        %v443 = vmul.f32 %v424, %v431
        %v444 = vmul.f32 %v429, %v431
        %445 = vset.pattern.permute.xlu0 1
        %446 = vperm.xlu0 %445, %v352
        %v447 = vpop.permute.xlu0 %446
        %449 = vset.pattern.permute.xlu0 1
        %450 = vperm.xlu0 %449, %v353
        %v451 = vpop.permute.xlu0 %450
        %453 = vset.pattern.permute.xlu0 1
        %454 = vperm.xlu0 %453, %v354
        %v455 = vpop.permute.xlu0 %454
        %457 = vset.pattern.permute.xlu0 1
        %458 = vperm.xlu0 %457, %v355
        %v459 = vpop.permute.xlu0 %458
        %461 = vset.pattern.permute.xlu0 1
        %462 = vperm.xlu0 %461, %v356
        %v463 = vpop.permute.xlu0 %462
        %465 = vset.pattern.permute.xlu0 1
        %466 = vperm.xlu0 %465, %v357
        %v467 = vpop.permute.xlu0 %466
        %469 = vset.pattern.permute.xlu0 1
        %470 = vperm.xlu0 %469, %v358
        %v471 = vpop.permute.xlu0 %470
        %473 = vset.pattern.permute.xlu0 1
        %474 = vperm.xlu0 %473, %v359
        %v475 = vpop.permute.xlu0 %474
        %477 = vset.pattern.permute.xlu0 1
        %478 = vperm.xlu0 %477, %v360
        %v479 = vpop.permute.xlu0 %478
        %481 = vset.pattern.permute.xlu0 1
        %482 = vperm.xlu0 %481, %v361
        %v483 = vpop.permute.xlu0 %482
        %485 = vset.pattern.permute.xlu0 1
        %486 = vperm.xlu0 %485, %v362
        %v487 = vpop.permute.xlu0 %486
        %489 = vset.pattern.permute.xlu0 1
        %490 = vperm.xlu0 %489, %v363
        %v491 = vpop.permute.xlu0 %490
        %493 = vset.pattern.permute.xlu0 1
        %494 = vperm.xlu0 %493, %v364
        %v495 = vpop.permute.xlu0 %494
        %v497 = vperm.slane %v365, 1
        %v498 = vmul.f32 %v447, %v497
        %v499 = vmul.f32 %v451, %v497
        %v500 = vmul.f32 %v455, %v497
        %v501 = vmul.f32 %v459, %v497
        %v502 = vmul.f32 %v463, %v497
        %v503 = vmul.f32 %v467, %v497
        %v504 = vmul.f32 %v471, %v497
        %v505 = vmul.f32 %v475, %v497
        %v506 = vmul.f32 %v479, %v497
        %v507 = vmul.f32 %v483, %v497
        %v508 = vmul.f32 %v487, %v497
        %v509 = vmul.f32 %v491, %v497
        %v510 = vmul.f32 %v495, %v497
        %v511 = vadd.f32 %v432, %v498
        %v512 = vadd.f32 %v433, %v499
        %v513 = vadd.f32 %v434, %v500
        %v514 = vadd.f32 %v435, %v501
        %v515 = vadd.f32 %v436, %v502
        %v516 = vadd.f32 %v437, %v503
        %v517 = vadd.f32 %v438, %v504
        %v518 = vadd.f32 %v439, %v505
        %v519 = vadd.f32 %v440, %v506
        %v520 = vadd.f32 %v441, %v507
        %v521 = vadd.f32 %v442, %v508
        %v522 = vadd.f32 %v443, %v509
        %v523 = vadd.f32 %v444, %v510
        %v524 = vld [vmem:[%s2] sm:$0x1]
        %v526 = vperm.slane %v524, 0
        %v528 = vadd.f32 %v511, %v526
        %v529 = vadd.f32 %v512, %v526
        %v530 = vadd.f32 %v513, %v526
        %v531 = vadd.f32 %v514, %v526
        %v532 = vadd.f32 %v515, %v526
        %v533 = vadd.f32 %v516, %v526
        %v534 = vadd.f32 %v517, %v526
        %v535 = vadd.f32 %v518, %v526
        %v536 = vadd.f32 %v519, %v526
        %v537 = vadd.f32 %v520, %v526
        %v538 = vadd.f32 %v521, %v526
        %v539 = vadd.f32 %v522, %v526
        %v540 = vadd.f32 %v523, %v526
        %v541 = vmax.f32 %v528, 0.0
        %v542 = vmax.f32 %v529, 0.0
        %v543 = vmax.f32 %v530, 0.0
        %v544 = vmax.f32 %v531, 0.0
        %v545 = vmax.f32 %v532, 0.0
        %v546 = vmax.f32 %v533, 0.0
        %v547 = vmax.f32 %v534, 0.0
        %v548 = vmax.f32 %v535, 0.0
        %v549 = vmax.f32 %v536, 0.0
        %v550 = vmax.f32 %v537, 0.0
        %v551 = vmax.f32 %v538, 0.0
        %v552 = vmax.f32 %v539, 0.0
        %v553 = vmax.f32 %v540, 0.0
        %v554 = vpack.c.bf16 %v542, %v541
        %v555 = vpack.c.bf16 %v544, %v543
        %v556 = vpack.c.bf16 %v546, %v545
        %v557 = vpack.c.bf16 %v548, %v547
        %v558 = vpack.c.bf16 %v550, %v549
        %v559 = vpack.c.bf16 %v552, %v551
        %v560 = vpack.c.bf16 %v553, %v553
        %v561 = vld [vmem:[%s3] sm:$0xf]
        %v562 = vld [vmem:[%s3 + $0x4] sm:$0x3]
        %v563 = vld [vmem:[%s4] sm:$0x1]
        %v565 = vperm.slane %v563, 0
        %v569 = vunpack.c.l.b16 %v561
        %v570 = vunpack.c.l.b16 %v562
        %v571 = vpack.c.b16 %v570, %v569
        %vm572 = vcmask 97280
        %v574 = vsel %vm572, %v554, 0
        %v577 = vsel %vm572, %v555, 0
        %v580 = vsel %vm572, %v556, 0
        %v583 = vsel %vm572, %v557, 0
        %v586 = vsel %vm572, %v558, 0
        %v589 = vsel %vm572, %v559, 0
        %v592 = vsel %vm572, %v560, 0
        %vm594 = vcmask 1045504
        %v596 = vsel %vm594, %v571, 0
        %598 = vmatpush.bf16.msra.mxu0 0
        %599 = vmatpush.bf16.msra.mxu0 0
        %600 = vmatpush.bf16.msra.mxu0 0
        %601 = vmatpush.bf16.msra.mxu0 0
        %602 = vmatpush.bf16.msra.mxu0 0
        %603 = vmatpush.bf16.msra.mxu0 0
        %604 = vmatpush.bf16.msra.mxu0 0
        %605 = vmatpush.bf16.msra.mxu0 %v596
        %606 = vmatmul.bf16.gmra.mxu0 %v574
        %v607 = vpop.f32.mrf.mxu0
        %v608 = vadd.f32 %v565, %v607
        %v609 = vpop.f32.mrf.mxu0
        %v610 = vadd.f32 %v565, %v609
        %611 = vmatmul.bf16.gmra.mxu0 %v577
        %v612 = vpop.f32.mrf.mxu0
        %v613 = vadd.f32 %v565, %v612
        %v614 = vpop.f32.mrf.mxu0
        %v615 = vadd.f32 %v565, %v614
        %616 = vmatmul.bf16.gmra.mxu0 %v580
        %v617 = vpop.f32.mrf.mxu0
        %v618 = vadd.f32 %v565, %v617
        %v619 = vpop.f32.mrf.mxu0
        %v620 = vadd.f32 %v565, %v619
        %621 = vmatmul.bf16.gmra.mxu0 %v583
        %v622 = vpop.f32.mrf.mxu0
        %v623 = vadd.f32 %v565, %v622
        %v624 = vpop.f32.mrf.mxu0
        %v625 = vadd.f32 %v565, %v624
        %626 = vmatmul.bf16.gmra.mxu0 %v586
        %v627 = vpop.f32.mrf.mxu0
        %v628 = vadd.f32 %v565, %v627
        %v629 = vpop.f32.mrf.mxu0
        %v630 = vadd.f32 %v565, %v629
        %631 = vmatmul.bf16.gmra.mxu0 %v589
        %v632 = vpop.f32.mrf.mxu0
        %v633 = vadd.f32 %v565, %v632
        %v634 = vpop.f32.mrf.mxu0
        %v635 = vadd.f32 %v565, %v634
        %636 = vmatmul.bf16.gmra.mxu0 %v592
        %v637 = vpop.f32.mrf.mxu0
        %v638 = vadd.f32 %v565, %v637
        %v639 = vpop.f32.mrf.mxu0
        %640 = vdwg.mxu0
        %v641 = vmax.f32 %v608, 0.0
        %v642 = vmax.f32 %v610, 0.0
        %v643 = vmax.f32 %v613, 0.0
        %v644 = vmax.f32 %v615, 0.0
        %v645 = vmax.f32 %v618, 0.0
        %v646 = vmax.f32 %v620, 0.0
        %v647 = vmax.f32 %v623, 0.0
        %v648 = vmax.f32 %v625, 0.0
        %v649 = vmax.f32 %v628, 0.0
        %v650 = vmax.f32 %v630, 0.0
        %v651 = vmax.f32 %v633, 0.0
        %v652 = vmax.f32 %v635, 0.0
        %v653 = vmax.f32 %v638, 0.0
        %v654 = vpack.c.bf16 %v642, %v641
        %v655 = vpack.c.bf16 %v644, %v643
        %v656 = vpack.c.bf16 %v646, %v645
        %v657 = vpack.c.bf16 %v648, %v647
        %v658 = vpack.c.bf16 %v650, %v649
        %v659 = vpack.c.bf16 %v652, %v651
        %v660 = vpack.c.bf16 %v653, %v653
        %v661 = vld [vmem:[%s5] sm:$0xf]
        %v662 = vld [vmem:[%s5 + $0x4] sm:$0xf]
        %v663 = vld [vmem:[%s5 + $0x8] sm:$0xf]
        %v664 = vld [vmem:[%s5 + $0xc] sm:$0xf]
        %v665 = vld [vmem:[%s5 + $0x10] sm:$0xf]
        %v666 = vld [vmem:[%s5 + $0x14] sm:$0xf]
        %v667 = vld [vmem:[%s5 + $0x18] sm:$0xf]
        %v668 = vld [vmem:[%s5 + $0x1c] sm:$0xf]
        %v669 = vld [vmem:[%s6] sm:$0x1]
        %v671 = vperm.slane %v669, 0
        %v681 = vunpack.c.l.b16 %v661
        %v682 = vunpack.c.l.b16 %v662
        %v683 = vunpack.c.l.b16 %v663
        %v684 = vunpack.c.l.b16 %v664
        %v685 = vunpack.c.l.b16 %v665
        %v686 = vunpack.c.l.b16 %v666
        %v687 = vunpack.c.l.b16 %v667
        %v688 = vunpack.c.l.b16 %v668
        %v689 = vpack.c.b16 %v682, %v681
        %v690 = vpack.c.b16 %v684, %v683
        %v691 = vpack.c.b16 %v686, %v685
        %v692 = vpack.c.b16 %v688, %v687
        %vm697 = vcmask 523264
        %v699 = vsel %vm697, %v654, 0
        %v702 = vsel %vm697, %v655, 0
        %v705 = vsel %vm697, %v656, 0
        %v708 = vsel %vm697, %v657, 0
        %v711 = vsel %vm697, %v658, 0
        %v714 = vsel %vm697, %v659, 0
        %v717 = vsel %vm697, %v660, 0
        %719 = vmatpush.bf16.msra.mxu0 0
        %720 = vmatpush.bf16.msra.mxu0 0
        %721 = vmatpush.bf16.msra.mxu0 0
        %722 = vmatpush.bf16.msra.mxu0 0
        %723 = vmatpush.bf16.msra.mxu0 %v692
        %724 = vmatpush.bf16.msra.mxu0 %v691
        %725 = vmatpush.bf16.msra.mxu0 %v690
        %726 = vmatpush.bf16.msra.mxu0 %v689
        %727 = vmatmul.bf16.gmra.mxu0 %v699
        %v728 = vpop.f32.mrf.mxu0
        %v729 = vadd.f32 %v671, %v728
        %v730 = vpop.f32.mrf.mxu0
        %v731 = vadd.f32 %v671, %v730
        %732 = vmatmul.bf16.gmra.mxu0 %v702
        %v733 = vpop.f32.mrf.mxu0
        %v734 = vadd.f32 %v671, %v733
        %v735 = vpop.f32.mrf.mxu0
        %v736 = vadd.f32 %v671, %v735
        %737 = vmatmul.bf16.gmra.mxu0 %v705
        %v738 = vpop.f32.mrf.mxu0
        %v739 = vadd.f32 %v671, %v738
        %v740 = vpop.f32.mrf.mxu0
        %v741 = vadd.f32 %v671, %v740
        %742 = vmatmul.bf16.gmra.mxu0 %v708
        %v743 = vpop.f32.mrf.mxu0
        %v744 = vadd.f32 %v671, %v743
        %v745 = vpop.f32.mrf.mxu0
        %v746 = vadd.f32 %v671, %v745
        %747 = vmatmul.bf16.gmra.mxu0 %v711
        %v748 = vpop.f32.mrf.mxu0
        %v749 = vadd.f32 %v671, %v748
        %v750 = vpop.f32.mrf.mxu0
        %v751 = vadd.f32 %v671, %v750
        %752 = vmatmul.bf16.gmra.mxu0 %v714
        %v753 = vpop.f32.mrf.mxu0
        %v754 = vadd.f32 %v671, %v753
        %v755 = vpop.f32.mrf.mxu0
        %v756 = vadd.f32 %v671, %v755
        %757 = vmatmul.bf16.gmra.mxu0 %v717
        %v758 = vpop.f32.mrf.mxu0
        %v759 = vadd.f32 %v671, %v758
        %v760 = vpop.f32.mrf.mxu0
        %761 = vdwg.mxu0
        %v762 = vmax.f32 %v729, 0.0
        %v763 = vmax.f32 %v731, 0.0
        %v764 = vmax.f32 %v734, 0.0
        %v765 = vmax.f32 %v736, 0.0
        %v766 = vmax.f32 %v739, 0.0
        %v767 = vmax.f32 %v741, 0.0
        %v768 = vmax.f32 %v744, 0.0
        %v769 = vmax.f32 %v746, 0.0
        %v770 = vmax.f32 %v749, 0.0
        %v771 = vmax.f32 %v751, 0.0
        %v772 = vmax.f32 %v754, 0.0
        %v773 = vmax.f32 %v756, 0.0
        %v774 = vmax.f32 %v759, 0.0
        %v775 = vpack.c.bf16 %v763, %v762
        %v776 = vpack.c.bf16 %v765, %v764
        %v777 = vpack.c.bf16 %v767, %v766
        %v778 = vpack.c.bf16 %v769, %v768
        %v779 = vpack.c.bf16 %v771, %v770
        %v780 = vpack.c.bf16 %v773, %v772
        %v781 = vpack.c.bf16 %v774, %v774
        %v782 = vld [vmem:[#allocation2] sm:$0xff]
        %v783 = vld [vmem:[#allocation2 + $0x8] sm:$0xff]
        %v784 = vld [vmem:[#allocation2 + $0x10] sm:$0xff]
        %v785 = vld [vmem:[#allocation2 + $0x18] sm:$0xf]
        %v786 = vld [vmem:[#allocation2 + $0x1c] sm:$0xff]
        %v787 = vld [vmem:[#allocation2 + $0x24] sm:$0xff]
        %v788 = vld [vmem:[#allocation2 + $0x2c] sm:$0xff]
        %v789 = vld [vmem:[#allocation2 + $0x34] sm:$0xf]
        %v790 = vld [vmem:[#allocation2 + $0x38] sm:$0xff]
        %v791 = vld [vmem:[#allocation2 + $0x40] sm:$0xff]
        %v792 = vld [vmem:[#allocation2 + $0x48] sm:$0xff]
        %v793 = vld [vmem:[#allocation2 + $0x50] sm:$0xf]
        %v794 = vld [vmem:[#allocation2 + $0x54] sm:$0xff]
        %v795 = vld [vmem:[#allocation2 + $0x5c] sm:$0xff]
        %v796 = vld [vmem:[#allocation2 + $0x64] sm:$0xff]
        %v797 = vld [vmem:[#allocation2 + $0x6c] sm:$0xf]
        %v798 = vld [vmem:[#allocation2 + $0x70] sm:$0xff]
        %v799 = vld [vmem:[#allocation2 + $0x78] sm:$0xff]
        %v800 = vld [vmem:[#allocation2 + $0x80] sm:$0xff]
        %v801 = vld [vmem:[#allocation2 + $0x88] sm:$0xf]
        %v802 = vld [vmem:[#allocation2 + $0x8c] sm:$0xff]
        %v803 = vld [vmem:[#allocation2 + $0x94] sm:$0xff]
        %v804 = vld [vmem:[#allocation2 + $0x9c] sm:$0xff]
        %v805 = vld [vmem:[#allocation2 + $0xa4] sm:$0xf]
        %v806 = vld [vmem:[#allocation2 + $0xa8] sm:$0xff]
        %v807 = vld [vmem:[#allocation2 + $0xb0] sm:$0xff]
        %v808 = vld [vmem:[#allocation2 + $0xb8] sm:$0xff]
        %v809 = vld [vmem:[#allocation2 + $0xc0] sm:$0xf]
        %v810 = vld [vmem:[#allocation2 + $0xc4] sm:$0xff]
        %v811 = vld [vmem:[#allocation2 + $0xcc] sm:$0xff]
        %v812 = vld [vmem:[#allocation2 + $0xd4] sm:$0xff]
        %v813 = vld [vmem:[#allocation2 + $0xdc] sm:$0xf]
        %v814 = vld [vmem:[#allocation2 + $0xe0] sm:$0xff]
        %v815 = vld [vmem:[#allocation2 + $0xe8] sm:$0xff]
        %v816 = vld [vmem:[#allocation2 + $0xf0] sm:$0xff]
        %v817 = vld [vmem:[#allocation2 + $0xf8] sm:$0xf]
        %v818 = vld [vmem:[#allocation2 + $0xfc] sm:$0xff]
        %v819 = vld [vmem:[#allocation2 + $0x104] sm:$0xff]
        %v820 = vld [vmem:[#allocation2 + $0x10c] sm:$0xff]
        %v821 = vld [vmem:[#allocation2 + $0x114] sm:$0xf]
        %v822 = vld [vmem:[#allocation2 + $0x118] sm:$0xff]
        %v823 = vld [vmem:[#allocation2 + $0x120] sm:$0xff]
        %v824 = vld [vmem:[#allocation2 + $0x128] sm:$0xff]
        %v825 = vld [vmem:[#allocation2 + $0x130] sm:$0xf]
        %v826 = vld [vmem:[#allocation2 + $0x134] sm:$0xff]
        %v827 = vld [vmem:[#allocation2 + $0x13c] sm:$0xff]
        %v828 = vld [vmem:[#allocation2 + $0x144] sm:$0xff]
        %v829 = vld [vmem:[#allocation2 + $0x14c] sm:$0xf]
        %v830 = vld [vmem:[#allocation2 + $0x150] sm:$0xff]
        %v831 = vld [vmem:[#allocation2 + $0x158] sm:$0xff]
        %v832 = vld [vmem:[#allocation2 + $0x160] sm:$0xff]
        %v833 = vld [vmem:[#allocation2 + $0x168] sm:$0xf]
        %v834 = vld [vmem:[#allocation2 + $0x16c] sm:$0xff]
        %v835 = vld [vmem:[#allocation2 + $0x174] sm:$0xff]
        %v836 = vld [vmem:[#allocation2 + $0x17c] sm:$0xff]
        %v837 = vld [vmem:[#allocation2 + $0x184] sm:$0xf]
        %v838 = vld [vmem:[#allocation2 + $0x188] sm:$0xff]
        %v839 = vld [vmem:[#allocation2 + $0x190] sm:$0xff]
        %v840 = vld [vmem:[#allocation2 + $0x198] sm:$0xff]
        %v841 = vld [vmem:[#allocation2 + $0x1a0] sm:$0xf]
        %v842 = vld [vmem:[#allocation2 + $0x1a4] sm:$0xff]
        %v843 = vld [vmem:[#allocation2 + $0x1ac] sm:$0xff]
        %v844 = vld [vmem:[#allocation2 + $0x1b4] sm:$0xff]
        %v845 = vld [vmem:[#allocation2 + $0x1bc] sm:$0xf]
        %v910 = vunpack.c.l.b16 %v782
        %v911 = vunpack.c.h.b16 %v782
        %v912 = vunpack.c.l.b16 %v783
        %v913 = vunpack.c.h.b16 %v783
        %v914 = vunpack.c.l.b16 %v784
        %v915 = vunpack.c.h.b16 %v784
        %v916 = vunpack.c.l.b16 %v785
        %v917 = vunpack.c.l.b16 %v786
        %v918 = vunpack.c.h.b16 %v786
        %v919 = vunpack.c.l.b16 %v787
        %v920 = vunpack.c.h.b16 %v787
        %v921 = vunpack.c.l.b16 %v788
        %v922 = vunpack.c.h.b16 %v788
        %v923 = vunpack.c.l.b16 %v789
        %v924 = vunpack.c.l.b16 %v790
        %v925 = vunpack.c.h.b16 %v790
        %v926 = vunpack.c.l.b16 %v791
        %v927 = vunpack.c.h.b16 %v791
        %v928 = vunpack.c.l.b16 %v792
        %v929 = vunpack.c.h.b16 %v792
        %v930 = vunpack.c.l.b16 %v793
        %v931 = vunpack.c.l.b16 %v794
        %v932 = vunpack.c.h.b16 %v794
        %v933 = vunpack.c.l.b16 %v795
        %v934 = vunpack.c.h.b16 %v795
        %v935 = vunpack.c.l.b16 %v796
        %v936 = vunpack.c.h.b16 %v796
        %v937 = vunpack.c.l.b16 %v797
        %v938 = vunpack.c.l.b16 %v798
        %v939 = vunpack.c.h.b16 %v798
        %v940 = vunpack.c.l.b16 %v799
        %v941 = vunpack.c.h.b16 %v799
        %v942 = vunpack.c.l.b16 %v800
        %v943 = vunpack.c.h.b16 %v800
        %v944 = vunpack.c.l.b16 %v801
        %v945 = vunpack.c.l.b16 %v802
        %v946 = vunpack.c.h.b16 %v802
        %v947 = vunpack.c.l.b16 %v803
        %v948 = vunpack.c.h.b16 %v803
        %v949 = vunpack.c.l.b16 %v804
        %v950 = vunpack.c.h.b16 %v804
        %v951 = vunpack.c.l.b16 %v805
        %v952 = vunpack.c.l.b16 %v806
        %v953 = vunpack.c.h.b16 %v806
        %v954 = vunpack.c.l.b16 %v807
        %v955 = vunpack.c.h.b16 %v807
        %v956 = vunpack.c.l.b16 %v808
        %v957 = vunpack.c.h.b16 %v808
        %v958 = vunpack.c.l.b16 %v809
        %v959 = vunpack.c.l.b16 %v810
        %v960 = vunpack.c.h.b16 %v810
        %v961 = vunpack.c.l.b16 %v811
        %v962 = vunpack.c.h.b16 %v811
        %v963 = vunpack.c.l.b16 %v812
        %v964 = vunpack.c.h.b16 %v812
        %v965 = vunpack.c.l.b16 %v813
        %v966 = vunpack.c.l.b16 %v814
        %v967 = vunpack.c.h.b16 %v814
        %v968 = vunpack.c.l.b16 %v815
        %v969 = vunpack.c.h.b16 %v815
        %v970 = vunpack.c.l.b16 %v816
        %v971 = vunpack.c.h.b16 %v816
        %v972 = vunpack.c.l.b16 %v817
        %v973 = vunpack.c.l.b16 %v818
        %v974 = vunpack.c.h.b16 %v818
        %v975 = vunpack.c.l.b16 %v819
        %v976 = vunpack.c.h.b16 %v819
        %v977 = vunpack.c.l.b16 %v820
        %v978 = vunpack.c.h.b16 %v820
        %v979 = vunpack.c.l.b16 %v821
        %v980 = vunpack.c.l.b16 %v822
        %v981 = vunpack.c.h.b16 %v822
        %v982 = vunpack.c.l.b16 %v823
        %v983 = vunpack.c.h.b16 %v823
        %v984 = vunpack.c.l.b16 %v824
        %v985 = vunpack.c.h.b16 %v824
        %v986 = vunpack.c.l.b16 %v825
        %v987 = vunpack.c.l.b16 %v826
        %v988 = vunpack.c.h.b16 %v826
        %v989 = vunpack.c.l.b16 %v827
        %v990 = vunpack.c.h.b16 %v827
        %v991 = vunpack.c.l.b16 %v828
        %v992 = vunpack.c.h.b16 %v828
        %v993 = vunpack.c.l.b16 %v829
        %v994 = vunpack.c.l.b16 %v830
        %v995 = vunpack.c.h.b16 %v830
        %v996 = vunpack.c.l.b16 %v831
        %v997 = vunpack.c.h.b16 %v831
        %v998 = vunpack.c.l.b16 %v832
        %v999 = vunpack.c.h.b16 %v832
        %v1000 = vunpack.c.l.b16 %v833
        %v1001 = vunpack.c.l.b16 %v834
        %v1002 = vunpack.c.h.b16 %v834
        %v1003 = vunpack.c.l.b16 %v835
        %v1004 = vunpack.c.h.b16 %v835
        %v1005 = vunpack.c.l.b16 %v836
        %v1006 = vunpack.c.h.b16 %v836
        %v1007 = vunpack.c.l.b16 %v837
        %v1008 = vunpack.c.l.b16 %v838
        %v1009 = vunpack.c.h.b16 %v838
        %v1010 = vunpack.c.l.b16 %v839
        %v1011 = vunpack.c.h.b16 %v839
        %v1012 = vunpack.c.l.b16 %v840
        %v1013 = vunpack.c.h.b16 %v840
        %v1014 = vunpack.c.l.b16 %v841
        %v1015 = vunpack.c.l.b16 %v842
        %v1016 = vunpack.c.h.b16 %v842
        %v1017 = vunpack.c.l.b16 %v843
        %v1018 = vunpack.c.h.b16 %v843
        %v1019 = vunpack.c.l.b16 %v844
        %v1020 = vunpack.c.h.b16 %v844
        %v1021 = vunpack.c.l.b16 %v845
        %v1022 = vpack.c.b16 %v917, %v910
        %v1023 = vpack.c.b16 %v918, %v911
        %v1024 = vpack.c.b16 %v919, %v912
        %v1025 = vpack.c.b16 %v920, %v913
        %v1026 = vpack.c.b16 %v921, %v914
        %v1027 = vpack.c.b16 %v922, %v915
        %v1028 = vpack.c.b16 %v923, %v916
        %v1029 = vpack.c.b16 %v931, %v924
        %v1030 = vpack.c.b16 %v932, %v925
        %v1031 = vpack.c.b16 %v933, %v926
        %v1032 = vpack.c.b16 %v934, %v927
        %v1033 = vpack.c.b16 %v935, %v928
        %v1034 = vpack.c.b16 %v936, %v929
        %v1035 = vpack.c.b16 %v937, %v930
        %v1036 = vpack.c.b16 %v945, %v938
        %v1037 = vpack.c.b16 %v946, %v939
        %v1038 = vpack.c.b16 %v947, %v940
        %v1039 = vpack.c.b16 %v948, %v941
        %v1040 = vpack.c.b16 %v949, %v942
        %v1041 = vpack.c.b16 %v950, %v943
        %v1042 = vpack.c.b16 %v951, %v944
        %v1043 = vpack.c.b16 %v959, %v952
        %v1044 = vpack.c.b16 %v960, %v953
        %v1045 = vpack.c.b16 %v961, %v954
        %v1046 = vpack.c.b16 %v962, %v955
        %v1047 = vpack.c.b16 %v963, %v956
        %v1048 = vpack.c.b16 %v964, %v957
        %v1049 = vpack.c.b16 %v965, %v958
        %v1050 = vpack.c.b16 %v973, %v966
        %v1051 = vpack.c.b16 %v974, %v967
        %v1052 = vpack.c.b16 %v975, %v968
        %v1053 = vpack.c.b16 %v976, %v969
        %v1054 = vpack.c.b16 %v977, %v970
        %v1055 = vpack.c.b16 %v978, %v971
        %v1056 = vpack.c.b16 %v979, %v972
        %v1057 = vpack.c.b16 %v987, %v980
        %v1058 = vpack.c.b16 %v988, %v981
        %v1059 = vpack.c.b16 %v989, %v982
        %v1060 = vpack.c.b16 %v990, %v983
        %v1061 = vpack.c.b16 %v991, %v984
        %v1062 = vpack.c.b16 %v992, %v985
        %v1063 = vpack.c.b16 %v993, %v986
        %v1064 = vpack.c.b16 %v1001, %v994
        %v1065 = vpack.c.b16 %v1002, %v995
        %v1066 = vpack.c.b16 %v1003, %v996
        %v1067 = vpack.c.b16 %v1004, %v997
        %v1068 = vpack.c.b16 %v1005, %v998
        %v1069 = vpack.c.b16 %v1006, %v999
        %v1070 = vpack.c.b16 %v1007, %v1000
        %v1071 = vpack.c.b16 %v1015, %v1008
        %v1072 = vpack.c.b16 %v1016, %v1009
        %v1073 = vpack.c.b16 %v1017, %v1010
        %v1074 = vpack.c.b16 %v1018, %v1011
        %v1075 = vpack.c.b16 %v1019, %v1012
        %v1076 = vpack.c.b16 %v1020, %v1013
        %v1077 = vpack.c.b16 %v1021, %v1014
        %1134 = vmatpush.bf16.msra.mxu0 %v1071
        %1135 = vmatpush.bf16.msra.mxu0 %v1064
        %1136 = vmatpush.bf16.msra.mxu0 %v1057
        %1137 = vmatpush.bf16.msra.mxu0 %v1050
        %1138 = vmatpush.bf16.msra.mxu0 %v1043
        %1139 = vmatpush.bf16.msra.mxu0 %v1036
        %1140 = vmatpush.bf16.msra.mxu0 %v1029
        %1141 = vmatpush.bf16.msra.mxu0 %v1022
        %1142 = vmatmul.bf16.gmra.mxu0 %v775
        %v1143 = vpop.f32.mrf.mxu0
        %v1144 = vadd.f32 0.0, %v1143
        %v1145 = vpop.f32.mrf.mxu0
        %v1146 = vadd.f32 0.0, %v1145
        %1147 = vmatmul.bf16.gmra.mxu0 %v776
        %v1148 = vpop.f32.mrf.mxu0
        %v1149 = vadd.f32 0.0, %v1148
        %v1150 = vpop.f32.mrf.mxu0
        %v1151 = vadd.f32 0.0, %v1150
        %1152 = vmatmul.bf16.gmra.mxu0 %v777
        %v1153 = vpop.f32.mrf.mxu0
        %v1154 = vadd.f32 0.0, %v1153
        %v1155 = vpop.f32.mrf.mxu0
        %v1156 = vadd.f32 0.0, %v1155
        %1157 = vmatmul.bf16.gmra.mxu0 %v778
        %v1158 = vpop.f32.mrf.mxu0
        %v1159 = vadd.f32 0.0, %v1158
        %v1160 = vpop.f32.mrf.mxu0
        %v1161 = vadd.f32 0.0, %v1160
        %1162 = vmatmul.bf16.gmra.mxu0 %v779
        %v1163 = vpop.f32.mrf.mxu0
        %v1164 = vadd.f32 0.0, %v1163
        %v1165 = vpop.f32.mrf.mxu0
        %v1166 = vadd.f32 0.0, %v1165
        %1167 = vmatmul.bf16.gmra.mxu0 %v780
        %v1168 = vpop.f32.mrf.mxu0
        %v1169 = vadd.f32 0.0, %v1168
        %v1170 = vpop.f32.mrf.mxu0
        %v1171 = vadd.f32 0.0, %v1170
        %1172 = vmatmul.bf16.gmra.mxu0 %v781
        %v1173 = vpop.f32.mrf.mxu0
        %v1174 = vadd.f32 0.0, %v1173
        %v1175 = vpop.f32.mrf.mxu0
        %1176 = vdwg.mxu0
        %1177 = vmatpush.bf16.msra.mxu0 %v1072
        %1178 = vmatpush.bf16.msra.mxu0 %v1065
        %1179 = vmatpush.bf16.msra.mxu0 %v1058
        %1180 = vmatpush.bf16.msra.mxu0 %v1051
        %1181 = vmatpush.bf16.msra.mxu0 %v1044
        %1182 = vmatpush.bf16.msra.mxu0 %v1037
        %1183 = vmatpush.bf16.msra.mxu0 %v1030
        %1184 = vmatpush.bf16.msra.mxu0 %v1023
        %1185 = vmatmul.bf16.gmra.mxu0 %v775
        %v1186 = vpop.f32.mrf.mxu0
        %v1187 = vadd.f32 0.0, %v1186
        %v1188 = vpop.f32.mrf.mxu0
        %v1189 = vadd.f32 0.0, %v1188
        %1190 = vmatmul.bf16.gmra.mxu0 %v776
        %v1191 = vpop.f32.mrf.mxu0
        %v1192 = vadd.f32 0.0, %v1191
        %v1193 = vpop.f32.mrf.mxu0
        %v1194 = vadd.f32 0.0, %v1193
        %1195 = vmatmul.bf16.gmra.mxu0 %v777
        %v1196 = vpop.f32.mrf.mxu0
        %v1197 = vadd.f32 0.0, %v1196
        %v1198 = vpop.f32.mrf.mxu0
        %v1199 = vadd.f32 0.0, %v1198
        %1200 = vmatmul.bf16.gmra.mxu0 %v778
        %v1201 = vpop.f32.mrf.mxu0
        %v1202 = vadd.f32 0.0, %v1201
        %v1203 = vpop.f32.mrf.mxu0
        %v1204 = vadd.f32 0.0, %v1203
        %1205 = vmatmul.bf16.gmra.mxu0 %v779
        %v1206 = vpop.f32.mrf.mxu0
        %v1207 = vadd.f32 0.0, %v1206
        %v1208 = vpop.f32.mrf.mxu0
        %v1209 = vadd.f32 0.0, %v1208
        %1210 = vmatmul.bf16.gmra.mxu0 %v780
        %v1211 = vpop.f32.mrf.mxu0
        %v1212 = vadd.f32 0.0, %v1211
        %v1213 = vpop.f32.mrf.mxu0
        %v1214 = vadd.f32 0.0, %v1213
        %1215 = vmatmul.bf16.gmra.mxu0 %v781
        %v1216 = vpop.f32.mrf.mxu0
        %v1217 = vadd.f32 0.0, %v1216
        %v1218 = vpop.f32.mrf.mxu0
        %1219 = vdwg.mxu0
        %1220 = vmatpush.bf16.msra.mxu0 %v1073
        %1221 = vmatpush.bf16.msra.mxu0 %v1066
        %1222 = vmatpush.bf16.msra.mxu0 %v1059
        %1223 = vmatpush.bf16.msra.mxu0 %v1052
        %1224 = vmatpush.bf16.msra.mxu0 %v1045
        %1225 = vmatpush.bf16.msra.mxu0 %v1038
        %1226 = vmatpush.bf16.msra.mxu0 %v1031
        %1227 = vmatpush.bf16.msra.mxu0 %v1024
        %1228 = vmatmul.bf16.gmra.mxu0 %v775
        %v1229 = vpop.f32.mrf.mxu0
        %v1230 = vadd.f32 0.0, %v1229
        %v1231 = vpop.f32.mrf.mxu0
        %v1232 = vadd.f32 0.0, %v1231
        %1233 = vmatmul.bf16.gmra.mxu0 %v776
        %v1234 = vpop.f32.mrf.mxu0
        %v1235 = vadd.f32 0.0, %v1234
        %v1236 = vpop.f32.mrf.mxu0
        %v1237 = vadd.f32 0.0, %v1236
        %1238 = vmatmul.bf16.gmra.mxu0 %v777
        %v1239 = vpop.f32.mrf.mxu0
        %v1240 = vadd.f32 0.0, %v1239
        %v1241 = vpop.f32.mrf.mxu0
        %v1242 = vadd.f32 0.0, %v1241
        %1243 = vmatmul.bf16.gmra.mxu0 %v778
        %v1244 = vpop.f32.mrf.mxu0
        %v1245 = vadd.f32 0.0, %v1244
        %v1246 = vpop.f32.mrf.mxu0
        %v1247 = vadd.f32 0.0, %v1246
        %1248 = vmatmul.bf16.gmra.mxu0 %v779
        %v1249 = vpop.f32.mrf.mxu0
        %v1250 = vadd.f32 0.0, %v1249
        %v1251 = vpop.f32.mrf.mxu0
        %v1252 = vadd.f32 0.0, %v1251
        %1253 = vmatmul.bf16.gmra.mxu0 %v780
        %v1254 = vpop.f32.mrf.mxu0
        %v1255 = vadd.f32 0.0, %v1254
        %v1256 = vpop.f32.mrf.mxu0
        %v1257 = vadd.f32 0.0, %v1256
        %1258 = vmatmul.bf16.gmra.mxu0 %v781
        %v1259 = vpop.f32.mrf.mxu0
        %v1260 = vadd.f32 0.0, %v1259
        %v1261 = vpop.f32.mrf.mxu0
        %1262 = vdwg.mxu0
        %1263 = vmatpush.bf16.msra.mxu0 %v1074
        %1264 = vmatpush.bf16.msra.mxu0 %v1067
        %1265 = vmatpush.bf16.msra.mxu0 %v1060
        %1266 = vmatpush.bf16.msra.mxu0 %v1053
        %1267 = vmatpush.bf16.msra.mxu0 %v1046
        %1268 = vmatpush.bf16.msra.mxu0 %v1039
        %1269 = vmatpush.bf16.msra.mxu0 %v1032
        %1270 = vmatpush.bf16.msra.mxu0 %v1025
        %1271 = vmatmul.bf16.gmra.mxu0 %v775
        %v1272 = vpop.f32.mrf.mxu0
        %v1273 = vadd.f32 0.0, %v1272
        %v1274 = vpop.f32.mrf.mxu0
        %v1275 = vadd.f32 0.0, %v1274
        %1276 = vmatmul.bf16.gmra.mxu0 %v776
        %v1277 = vpop.f32.mrf.mxu0
        %v1278 = vadd.f32 0.0, %v1277
        %v1279 = vpop.f32.mrf.mxu0
        %v1280 = vadd.f32 0.0, %v1279
        %1281 = vmatmul.bf16.gmra.mxu0 %v777
        %v1282 = vpop.f32.mrf.mxu0
        %v1283 = vadd.f32 0.0, %v1282
        %v1284 = vpop.f32.mrf.mxu0
        %v1285 = vadd.f32 0.0, %v1284
        %1286 = vmatmul.bf16.gmra.mxu0 %v778
        %v1287 = vpop.f32.mrf.mxu0
        %v1288 = vadd.f32 0.0, %v1287
        %v1289 = vpop.f32.mrf.mxu0
        %v1290 = vadd.f32 0.0, %v1289
        %1291 = vmatmul.bf16.gmra.mxu0 %v779
        %v1292 = vpop.f32.mrf.mxu0
        %v1293 = vadd.f32 0.0, %v1292
        %v1294 = vpop.f32.mrf.mxu0
        %v1295 = vadd.f32 0.0, %v1294
        %1296 = vmatmul.bf16.gmra.mxu0 %v780
        %v1297 = vpop.f32.mrf.mxu0
        %v1298 = vadd.f32 0.0, %v1297
        %v1299 = vpop.f32.mrf.mxu0
        %v1300 = vadd.f32 0.0, %v1299
        %1301 = vmatmul.bf16.gmra.mxu0 %v781
        %v1302 = vpop.f32.mrf.mxu0
        %v1303 = vadd.f32 0.0, %v1302
        %v1304 = vpop.f32.mrf.mxu0
        %1305 = vdwg.mxu0
        %1306 = vmatpush.bf16.msra.mxu0 %v1075
        %1307 = vmatpush.bf16.msra.mxu0 %v1068
        %1308 = vmatpush.bf16.msra.mxu0 %v1061
        %1309 = vmatpush.bf16.msra.mxu0 %v1054
        %1310 = vmatpush.bf16.msra.mxu0 %v1047
        %1311 = vmatpush.bf16.msra.mxu0 %v1040
        %1312 = vmatpush.bf16.msra.mxu0 %v1033
        %1313 = vmatpush.bf16.msra.mxu0 %v1026
        %1314 = vmatmul.bf16.gmra.mxu0 %v775
        %v1315 = vpop.f32.mrf.mxu0
        %v1316 = vadd.f32 0.0, %v1315
        %v1317 = vpop.f32.mrf.mxu0
        %v1318 = vadd.f32 0.0, %v1317
        %1319 = vmatmul.bf16.gmra.mxu0 %v776
        %v1320 = vpop.f32.mrf.mxu0
        %v1321 = vadd.f32 0.0, %v1320
        %v1322 = vpop.f32.mrf.mxu0
        %v1323 = vadd.f32 0.0, %v1322
        %1324 = vmatmul.bf16.gmra.mxu0 %v777
        %v1325 = vpop.f32.mrf.mxu0
        %v1326 = vadd.f32 0.0, %v1325
        %v1327 = vpop.f32.mrf.mxu0
        %v1328 = vadd.f32 0.0, %v1327
        %1329 = vmatmul.bf16.gmra.mxu0 %v778
        %v1330 = vpop.f32.mrf.mxu0
        %v1331 = vadd.f32 0.0, %v1330
        %v1332 = vpop.f32.mrf.mxu0
        %v1333 = vadd.f32 0.0, %v1332
        %1334 = vmatmul.bf16.gmra.mxu0 %v779
        %v1335 = vpop.f32.mrf.mxu0
        %v1336 = vadd.f32 0.0, %v1335
        %v1337 = vpop.f32.mrf.mxu0
        %v1338 = vadd.f32 0.0, %v1337
        %1339 = vmatmul.bf16.gmra.mxu0 %v780
        %v1340 = vpop.f32.mrf.mxu0
        %v1341 = vadd.f32 0.0, %v1340
        %v1342 = vpop.f32.mrf.mxu0
        %v1343 = vadd.f32 0.0, %v1342
        %1344 = vmatmul.bf16.gmra.mxu0 %v781
        %v1345 = vpop.f32.mrf.mxu0
        %v1346 = vadd.f32 0.0, %v1345
        %v1347 = vpop.f32.mrf.mxu0
        %1348 = vdwg.mxu0
        %1349 = vmatpush.bf16.msra.mxu0 %v1076
        %1350 = vmatpush.bf16.msra.mxu0 %v1069
        %1351 = vmatpush.bf16.msra.mxu0 %v1062
        %1352 = vmatpush.bf16.msra.mxu0 %v1055
        %1353 = vmatpush.bf16.msra.mxu0 %v1048
        %1354 = vmatpush.bf16.msra.mxu0 %v1041
        %1355 = vmatpush.bf16.msra.mxu0 %v1034
        %1356 = vmatpush.bf16.msra.mxu0 %v1027
        %1357 = vmatmul.bf16.gmra.mxu0 %v775
        %v1358 = vpop.f32.mrf.mxu0
        %v1359 = vadd.f32 0.0, %v1358
        %v1360 = vpop.f32.mrf.mxu0
        %v1361 = vadd.f32 0.0, %v1360
        %1362 = vmatmul.bf16.gmra.mxu0 %v776
        %v1363 = vpop.f32.mrf.mxu0
        %v1364 = vadd.f32 0.0, %v1363
        %v1365 = vpop.f32.mrf.mxu0
        %v1366 = vadd.f32 0.0, %v1365
        %1367 = vmatmul.bf16.gmra.mxu0 %v777
        %v1368 = vpop.f32.mrf.mxu0
        %v1369 = vadd.f32 0.0, %v1368
        %v1370 = vpop.f32.mrf.mxu0
        %v1371 = vadd.f32 0.0, %v1370
        %1372 = vmatmul.bf16.gmra.mxu0 %v778
        %v1373 = vpop.f32.mrf.mxu0
        %v1374 = vadd.f32 0.0, %v1373
        %v1375 = vpop.f32.mrf.mxu0
        %v1376 = vadd.f32 0.0, %v1375
        %1377 = vmatmul.bf16.gmra.mxu0 %v779
        %v1378 = vpop.f32.mrf.mxu0
        %v1379 = vadd.f32 0.0, %v1378
        %v1380 = vpop.f32.mrf.mxu0
        %v1381 = vadd.f32 0.0, %v1380
        %1382 = vmatmul.bf16.gmra.mxu0 %v780
        %v1383 = vpop.f32.mrf.mxu0
        %v1384 = vadd.f32 0.0, %v1383
        %v1385 = vpop.f32.mrf.mxu0
        %v1386 = vadd.f32 0.0, %v1385
        %1387 = vmatmul.bf16.gmra.mxu0 %v781
        %v1388 = vpop.f32.mrf.mxu0
        %v1389 = vadd.f32 0.0, %v1388
        %v1390 = vpop.f32.mrf.mxu0
        %1391 = vdwg.mxu0
        %1392 = vmatpush.bf16.msra.mxu0 %v1077
        %1393 = vmatpush.bf16.msra.mxu0 %v1070
        %1394 = vmatpush.bf16.msra.mxu0 %v1063
        %1395 = vmatpush.bf16.msra.mxu0 %v1056
        %1396 = vmatpush.bf16.msra.mxu0 %v1049
        %1397 = vmatpush.bf16.msra.mxu0 %v1042
        %1398 = vmatpush.bf16.msra.mxu0 %v1035
        %1399 = vmatpush.bf16.msra.mxu0 %v1028
        %1400 = vmatmul.bf16.gmra.mxu0 %v775
        %v1401 = vpop.f32.mrf.mxu0
        %v1402 = vadd.f32 0.0, %v1401
        %v1403 = vpop.f32.mrf.mxu0
        %v1404 = vadd.f32 0.0, %v1403
        %1405 = vmatmul.bf16.gmra.mxu0 %v776
        %v1406 = vpop.f32.mrf.mxu0
        %v1407 = vadd.f32 0.0, %v1406
        %v1408 = vpop.f32.mrf.mxu0
        %v1409 = vadd.f32 0.0, %v1408
        %1410 = vmatmul.bf16.gmra.mxu0 %v777
        %v1411 = vpop.f32.mrf.mxu0
        %v1412 = vadd.f32 0.0, %v1411
        %v1413 = vpop.f32.mrf.mxu0
        %v1414 = vadd.f32 0.0, %v1413
        %1415 = vmatmul.bf16.gmra.mxu0 %v778
        %v1416 = vpop.f32.mrf.mxu0
        %v1417 = vadd.f32 0.0, %v1416
        %v1418 = vpop.f32.mrf.mxu0
        %v1419 = vadd.f32 0.0, %v1418
        %1420 = vmatmul.bf16.gmra.mxu0 %v779
        %v1421 = vpop.f32.mrf.mxu0
        %v1422 = vadd.f32 0.0, %v1421
        %v1423 = vpop.f32.mrf.mxu0
        %v1424 = vadd.f32 0.0, %v1423
        %1425 = vmatmul.bf16.gmra.mxu0 %v780
        %v1426 = vpop.f32.mrf.mxu0
        %v1427 = vadd.f32 0.0, %v1426
        %v1428 = vpop.f32.mrf.mxu0
        %v1429 = vadd.f32 0.0, %v1428
        %1430 = vmatmul.bf16.gmra.mxu0 %v781
        %v1431 = vpop.f32.mrf.mxu0
        %v1432 = vadd.f32 0.0, %v1431
        %v1433 = vpop.f32.mrf.mxu0
        %1434 = vdwg.mxu0
        %v1435 = vld [vmem:[%s8] sm:$0x7f]
        %v1437 = vperm.slane %v1435, 0
        %v1438 = vperm.slane %v1435, 1
        %v1439 = vperm.slane %v1435, 2
        %v1440 = vperm.slane %v1435, 3
        %v1441 = vperm.slane %v1435, 4
        %v1442 = vperm.slane %v1435, 5
        %v1443 = vperm.slane %v1435, 6
        %v1451 = vadd.f32 %v1144, %v1437
        %v1452 = vadd.f32 %v1187, %v1438
        %v1453 = vadd.f32 %v1230, %v1439
        %v1454 = vadd.f32 %v1273, %v1440
        %v1455 = vadd.f32 %v1316, %v1441
        %v1456 = vadd.f32 %v1359, %v1442
        %v1457 = vadd.f32 %v1402, %v1443
        %v1458 = vadd.f32 %v1146, %v1437
        %v1459 = vadd.f32 %v1189, %v1438
        %v1460 = vadd.f32 %v1232, %v1439
        %v1461 = vadd.f32 %v1275, %v1440
        %v1462 = vadd.f32 %v1318, %v1441
        %v1463 = vadd.f32 %v1361, %v1442
        %v1464 = vadd.f32 %v1404, %v1443
        %v1465 = vadd.f32 %v1149, %v1437
        %v1466 = vadd.f32 %v1192, %v1438
        %v1467 = vadd.f32 %v1235, %v1439
        %v1468 = vadd.f32 %v1278, %v1440
        %v1469 = vadd.f32 %v1321, %v1441
        %v1470 = vadd.f32 %v1364, %v1442
        %v1471 = vadd.f32 %v1407, %v1443
        %v1472 = vadd.f32 %v1151, %v1437
        %v1473 = vadd.f32 %v1194, %v1438
        %v1474 = vadd.f32 %v1237, %v1439
        %v1475 = vadd.f32 %v1280, %v1440
        %v1476 = vadd.f32 %v1323, %v1441
        %v1477 = vadd.f32 %v1366, %v1442
        %v1478 = vadd.f32 %v1409, %v1443
        %v1479 = vadd.f32 %v1154, %v1437
        %v1480 = vadd.f32 %v1197, %v1438
        %v1481 = vadd.f32 %v1240, %v1439
        %v1482 = vadd.f32 %v1283, %v1440
        %v1483 = vadd.f32 %v1326, %v1441
        %v1484 = vadd.f32 %v1369, %v1442
        %v1485 = vadd.f32 %v1412, %v1443
        %v1486 = vadd.f32 %v1156, %v1437
        %v1487 = vadd.f32 %v1199, %v1438
        %v1488 = vadd.f32 %v1242, %v1439
        %v1489 = vadd.f32 %v1285, %v1440
        %v1490 = vadd.f32 %v1328, %v1441
        %v1491 = vadd.f32 %v1371, %v1442
        %v1492 = vadd.f32 %v1414, %v1443
        %v1493 = vadd.f32 %v1159, %v1437
        %v1494 = vadd.f32 %v1202, %v1438
        %v1495 = vadd.f32 %v1245, %v1439
        %v1496 = vadd.f32 %v1288, %v1440
        %v1497 = vadd.f32 %v1331, %v1441
        %v1498 = vadd.f32 %v1374, %v1442
        %v1499 = vadd.f32 %v1417, %v1443
        %v1500 = vadd.f32 %v1161, %v1437
        %v1501 = vadd.f32 %v1204, %v1438
        %v1502 = vadd.f32 %v1247, %v1439
        %v1503 = vadd.f32 %v1290, %v1440
        %v1504 = vadd.f32 %v1333, %v1441
        %v1505 = vadd.f32 %v1376, %v1442
        %v1506 = vadd.f32 %v1419, %v1443
        %v1507 = vadd.f32 %v1164, %v1437
        %v1508 = vadd.f32 %v1207, %v1438
        %v1509 = vadd.f32 %v1250, %v1439
        %v1510 = vadd.f32 %v1293, %v1440
        %v1511 = vadd.f32 %v1336, %v1441
        %v1512 = vadd.f32 %v1379, %v1442
        %v1513 = vadd.f32 %v1422, %v1443
        %v1514 = vadd.f32 %v1166, %v1437
        %v1515 = vadd.f32 %v1209, %v1438
        %v1516 = vadd.f32 %v1252, %v1439
        %v1517 = vadd.f32 %v1295, %v1440
        %v1518 = vadd.f32 %v1338, %v1441
        %v1519 = vadd.f32 %v1381, %v1442
        %v1520 = vadd.f32 %v1424, %v1443
        %v1521 = vadd.f32 %v1169, %v1437
        %v1522 = vadd.f32 %v1212, %v1438
        %v1523 = vadd.f32 %v1255, %v1439
        %v1524 = vadd.f32 %v1298, %v1440
        %v1525 = vadd.f32 %v1341, %v1441
        %v1526 = vadd.f32 %v1384, %v1442
        %v1527 = vadd.f32 %v1427, %v1443
        %v1528 = vadd.f32 %v1171, %v1437
        %v1529 = vadd.f32 %v1214, %v1438
        %v1530 = vadd.f32 %v1257, %v1439
        %v1531 = vadd.f32 %v1300, %v1440
        %v1532 = vadd.f32 %v1343, %v1441
        %v1533 = vadd.f32 %v1386, %v1442
        %v1534 = vadd.f32 %v1429, %v1443
        %v1535 = vadd.f32 %v1174, %v1437
        %v1536 = vadd.f32 %v1217, %v1438
        %v1537 = vadd.f32 %v1260, %v1439
        %v1538 = vadd.f32 %v1303, %v1440
        %v1539 = vadd.f32 %v1346, %v1441
        %v1540 = vadd.f32 %v1389, %v1442
        %v1541 = vadd.f32 %v1432, %v1443
        %v1542 = vtanh.pop %v1451
        %v1543 = vtanh.pop %v1452
        %v1544 = vtanh.pop %v1453
        %v1545 = vtanh.pop %v1454
        %v1546 = vtanh.pop %v1455
        %v1547 = vtanh.pop %v1456
        %v1548 = vtanh.pop %v1457
        %v1549 = vtanh.pop %v1458
        %v1550 = vtanh.pop %v1459
        %v1551 = vtanh.pop %v1460
        %v1552 = vtanh.pop %v1461
        %v1553 = vtanh.pop %v1462
        %v1554 = vtanh.pop %v1463
        %v1555 = vtanh.pop %v1464
        %v1556 = vtanh.pop %v1465
        %v1557 = vtanh.pop %v1466
        %v1558 = vtanh.pop %v1467
        %v1559 = vtanh.pop %v1468
        %v1560 = vtanh.pop %v1469
        %v1561 = vtanh.pop %v1470
        %v1562 = vtanh.pop %v1471
        %v1563 = vtanh.pop %v1472
        %v1564 = vtanh.pop %v1473
        %v1565 = vtanh.pop %v1474
        %v1566 = vtanh.pop %v1475
        %v1567 = vtanh.pop %v1476
        %v1568 = vtanh.pop %v1477
        %v1569 = vtanh.pop %v1478
        %v1570 = vtanh.pop %v1479
        %v1571 = vtanh.pop %v1480
        %v1572 = vtanh.pop %v1481
        %v1573 = vtanh.pop %v1482
        %v1574 = vtanh.pop %v1483
        %v1575 = vtanh.pop %v1484
        %v1576 = vtanh.pop %v1485
        %v1577 = vtanh.pop %v1486
        %v1578 = vtanh.pop %v1487
        %v1579 = vtanh.pop %v1488
        %v1580 = vtanh.pop %v1489
        %v1581 = vtanh.pop %v1490
        %v1582 = vtanh.pop %v1491
        %v1583 = vtanh.pop %v1492
        %v1584 = vtanh.pop %v1493
        %v1585 = vtanh.pop %v1494
        %v1586 = vtanh.pop %v1495
        %v1587 = vtanh.pop %v1496
        %v1588 = vtanh.pop %v1497
        %v1589 = vtanh.pop %v1498
        %v1590 = vtanh.pop %v1499
        %v1591 = vtanh.pop %v1500
        %v1592 = vtanh.pop %v1501
        %v1593 = vtanh.pop %v1502
        %v1594 = vtanh.pop %v1503
        %v1595 = vtanh.pop %v1504
        %v1596 = vtanh.pop %v1505
        %v1597 = vtanh.pop %v1506
        %v1598 = vtanh.pop %v1507
        %v1599 = vtanh.pop %v1508
        %v1600 = vtanh.pop %v1509
        %v1601 = vtanh.pop %v1510
        %v1602 = vtanh.pop %v1511
        %v1603 = vtanh.pop %v1512
        %v1604 = vtanh.pop %v1513
        %v1605 = vtanh.pop %v1514
        %v1606 = vtanh.pop %v1515
        %v1607 = vtanh.pop %v1516
        %v1608 = vtanh.pop %v1517
        %v1609 = vtanh.pop %v1518
        %v1610 = vtanh.pop %v1519
        %v1611 = vtanh.pop %v1520
        %v1612 = vtanh.pop %v1521
        %v1613 = vtanh.pop %v1522
        %v1614 = vtanh.pop %v1523
        %v1615 = vtanh.pop %v1524
        %v1616 = vtanh.pop %v1525
        %v1617 = vtanh.pop %v1526
        %v1618 = vtanh.pop %v1527
        %v1619 = vtanh.pop %v1528
        %v1620 = vtanh.pop %v1529
        %v1621 = vtanh.pop %v1530
        %v1622 = vtanh.pop %v1531
        %v1623 = vtanh.pop %v1532
        %v1624 = vtanh.pop %v1533
        %v1625 = vtanh.pop %v1534
        %v1626 = vtanh.pop %v1535
        %v1627 = vtanh.pop %v1536
        %v1628 = vtanh.pop %v1537
        %v1629 = vtanh.pop %v1538
        %v1630 = vtanh.pop %v1539
        %v1631 = vtanh.pop %v1540
        %v1632 = vtanh.pop %v1541
        %1633 = vst [vmem:[%s343] sm:$0xff] %v1542
        %1634 = vst [vmem:[%s343 + $0x8] sm:$0xff] %v1543
        %1635 = vst [vmem:[%s343 + $0x10] sm:$0xff] %v1544
        %1636 = vst [vmem:[%s343 + $0x18] sm:$0xff] %v1545
        %1637 = vst [vmem:[%s343 + $0x20] sm:$0xff] %v1546
        %1638 = vst [vmem:[%s343 + $0x28] sm:$0xff] %v1547
        %vm1639 = vcmask 130048
        %1640 = vst.msk [vmem:[%s343 + $0x30] sm:$0xff] %vm1639, %v1548
        %1641 = vst [vmem:[%s343 + $0x38] sm:$0xff] %v1549
        %1642 = vst [vmem:[%s343 + $0x40] sm:$0xff] %v1550
        %1643 = vst [vmem:[%s343 + $0x48] sm:$0xff] %v1551
        %1644 = vst [vmem:[%s343 + $0x50] sm:$0xff] %v1552
        %1645 = vst [vmem:[%s343 + $0x58] sm:$0xff] %v1553
        %1646 = vst [vmem:[%s343 + $0x60] sm:$0xff] %v1554
        %1647 = vst.msk [vmem:[%s343 + $0x68] sm:$0xff] %vm1639, %v1555
        %1648 = vst [vmem:[%s343 + $0x70] sm:$0xff] %v1556
        %1649 = vst [vmem:[%s343 + $0x78] sm:$0xff] %v1557
        %1650 = vst [vmem:[%s343 + $0x80] sm:$0xff] %v1558
        %1651 = vst [vmem:[%s343 + $0x88] sm:$0xff] %v1559
        %1652 = vst [vmem:[%s343 + $0x90] sm:$0xff] %v1560
        %1653 = vst [vmem:[%s343 + $0x98] sm:$0xff] %v1561
        %1654 = vst.msk [vmem:[%s343 + $0xa0] sm:$0xff] %vm1639, %v1562
        %1655 = vst [vmem:[%s343 + $0xa8] sm:$0xff] %v1563
        %1656 = vst [vmem:[%s343 + $0xb0] sm:$0xff] %v1564
        %1657 = vst [vmem:[%s343 + $0xb8] sm:$0xff] %v1565
        %1658 = vst [vmem:[%s343 + $0xc0] sm:$0xff] %v1566
        %1659 = vst [vmem:[%s343 + $0xc8] sm:$0xff] %v1567
        %1660 = vst [vmem:[%s343 + $0xd0] sm:$0xff] %v1568
        %1661 = vst.msk [vmem:[%s343 + $0xd8] sm:$0xff] %vm1639, %v1569
        %1662 = vst [vmem:[%s343 + $0xe0] sm:$0xff] %v1570
        %1663 = vst [vmem:[%s343 + $0xe8] sm:$0xff] %v1571
        %1664 = vst [vmem:[%s343 + $0xf0] sm:$0xff] %v1572
        %1665 = vst [vmem:[%s343 + $0xf8] sm:$0xff] %v1573
        %1666 = vst [vmem:[%s343 + $0x100] sm:$0xff] %v1574
        %1667 = vst [vmem:[%s343 + $0x108] sm:$0xff] %v1575
        %1668 = vst.msk [vmem:[%s343 + $0x110] sm:$0xff] %vm1639, %v1576
        %1669 = vst [vmem:[%s343 + $0x118] sm:$0xff] %v1577
        %1670 = vst [vmem:[%s343 + $0x120] sm:$0xff] %v1578
        %1671 = vst [vmem:[%s343 + $0x128] sm:$0xff] %v1579
        %1672 = vst [vmem:[%s343 + $0x130] sm:$0xff] %v1580
        %1673 = vst [vmem:[%s343 + $0x138] sm:$0xff] %v1581
        %1674 = vst [vmem:[%s343 + $0x140] sm:$0xff] %v1582
        %1675 = vst.msk [vmem:[%s343 + $0x148] sm:$0xff] %vm1639, %v1583
        %1676 = vst [vmem:[%s343 + $0x150] sm:$0xff] %v1584
        %1677 = vst [vmem:[%s343 + $0x158] sm:$0xff] %v1585
        %1678 = vst [vmem:[%s343 + $0x160] sm:$0xff] %v1586
        %1679 = vst [vmem:[%s343 + $0x168] sm:$0xff] %v1587
        %1680 = vst [vmem:[%s343 + $0x170] sm:$0xff] %v1588
        %1681 = vst [vmem:[%s343 + $0x178] sm:$0xff] %v1589
        %1682 = vst.msk [vmem:[%s343 + $0x180] sm:$0xff] %vm1639, %v1590
        %1683 = vst [vmem:[%s343 + $0x188] sm:$0xff] %v1591
        %1684 = vst [vmem:[%s343 + $0x190] sm:$0xff] %v1592
        %1685 = vst [vmem:[%s343 + $0x198] sm:$0xff] %v1593
        %1686 = vst [vmem:[%s343 + $0x1a0] sm:$0xff] %v1594
        %1687 = vst [vmem:[%s343 + $0x1a8] sm:$0xff] %v1595
        %1688 = vst [vmem:[%s343 + $0x1b0] sm:$0xff] %v1596
        %1689 = vst.msk [vmem:[%s343 + $0x1b8] sm:$0xff] %vm1639, %v1597
        %1690 = vst [vmem:[%s343 + $0x1c0] sm:$0xff] %v1598
        %1691 = vst [vmem:[%s343 + $0x1c8] sm:$0xff] %v1599
        %1692 = vst [vmem:[%s343 + $0x1d0] sm:$0xff] %v1600
        %1693 = vst [vmem:[%s343 + $0x1d8] sm:$0xff] %v1601
        %1694 = vst [vmem:[%s343 + $0x1e0] sm:$0xff] %v1602
        %1695 = vst [vmem:[%s343 + $0x1e8] sm:$0xff] %v1603
        %1696 = vst.msk [vmem:[%s343 + $0x1f0] sm:$0xff] %vm1639, %v1604
        %1697 = vst [vmem:[%s343 + $0x1f8] sm:$0xff] %v1605
        %1698 = vst [vmem:[%s343 + $0x200] sm:$0xff] %v1606
        %1699 = vst [vmem:[%s343 + $0x208] sm:$0xff] %v1607
        %1700 = vst [vmem:[%s343 + $0x210] sm:$0xff] %v1608
        %1701 = vst [vmem:[%s343 + $0x218] sm:$0xff] %v1609
        %1702 = vst [vmem:[%s343 + $0x220] sm:$0xff] %v1610
        %1703 = vst.msk [vmem:[%s343 + $0x228] sm:$0xff] %vm1639, %v1611
        %1704 = vst [vmem:[%s343 + $0x230] sm:$0xff] %v1612
        %1705 = vst [vmem:[%s343 + $0x238] sm:$0xff] %v1613
        %1706 = vst [vmem:[%s343 + $0x240] sm:$0xff] %v1614
        %1707 = vst [vmem:[%s343 + $0x248] sm:$0xff] %v1615
        %1708 = vst [vmem:[%s343 + $0x250] sm:$0xff] %v1616
        %1709 = vst [vmem:[%s343 + $0x258] sm:$0xff] %v1617
        %1710 = vst.msk [vmem:[%s343 + $0x260] sm:$0xff] %vm1639, %v1618
        %1711 = vst [vmem:[%s343 + $0x268] sm:$0xff] %v1619
        %1712 = vst [vmem:[%s343 + $0x270] sm:$0xff] %v1620
        %1713 = vst [vmem:[%s343 + $0x278] sm:$0xff] %v1621
        %1714 = vst [vmem:[%s343 + $0x280] sm:$0xff] %v1622
        %1715 = vst [vmem:[%s343 + $0x288] sm:$0xff] %v1623
        %1716 = vst [vmem:[%s343 + $0x290] sm:$0xff] %v1624
        %1717 = vst.msk [vmem:[%s343 + $0x298] sm:$0xff] %vm1639, %v1625
        %1718 = vst [vmem:[%s343 + $0x2a0] sm:$0xff] %v1626
        %1719 = vst [vmem:[%s343 + $0x2a8] sm:$0xff] %v1627
        %1720 = vst [vmem:[%s343 + $0x2b0] sm:$0xff] %v1628
        %1721 = vst [vmem:[%s343 + $0x2b8] sm:$0xff] %v1629
        %1722 = vst [vmem:[%s343 + $0x2c0] sm:$0xff] %v1630
        %1723 = vst [vmem:[%s343 + $0x2c8] sm:$0xff] %v1631
        %1724 = vst.msk [vmem:[%s343 + $0x2d0] sm:$0xff] %vm1639, %v1632
        %s1725 = sand.u32 %s226, 1
        %s1726 = scalar_lea.sflag [#allocation4], %s1725
        %s1727 = sand.u32 %s226, 1
        %s1728 = smul.addr %s1727, 728
        %s1729 = scalar_lea.vmem [#allocation5], %s1728
        // Predicated region
        $region61: #{tpu_custom_call.1} parent=55 // pred_check
          %p1730 = pneg %p236
        $region62: #{tpu_custom_call.1} parent=55 // pred_check_branch
          %1732 = sbr.rel (%p1730) target = $region64
        $region63: #{tpu_custom_call.1} parent=55 // pred_region
          %s1733 = smul.u32 13, %s24
          %1735 = vsyncadd %s1726, 0
          %s1736 = smul.addr %s1733, 7
          %s1737 = smul.addr %s1736, 8
          %s1738 = scalar_lea.hbm %s9, %s1737
          %s1739 = sshll.u32 %s1729, 4
          %s1740 = int_to_ptr.vmem [resolvable:$true] %s1739
          %s1741 = sshll.u32 %s1738, 4
          %s1742 = int_to_ptr.hbm [resolvable:$true] %s1741
          %1747 = dma.vmem_to_hbm [thread:$0]  %s1740, 11648, %s1742, %s1726, 896, 896, 56
        $region64: #{tpu_custom_call.1} parent=55 // pred_fallthru
          _
      $region56: #{tpu_custom_call.1} parent=5 // pred_fallthru
        _
      %p1748 = scmp.le.s32.totalorder 2, %s19
      // Predicated region
      $region65: #{tpu_custom_call.1} parent=5 // pred_check
        %p1749 = pneg %p1748
      $region66: #{tpu_custom_call.1} parent=5 // pred_check_branch
        %1751 = sbr.rel (%p1749) target = $region68
      $region67: #{tpu_custom_call.1} parent=5 // pred_region
        %s1752 = ssub.s32 %s19, 2
        // Predicated region
        $region69: #{tpu_custom_call.1} parent=67 // pred_check
          %p1753 = pneg %p242
        $region70: #{tpu_custom_call.1} parent=67 // pred_check_branch
          %1755 = sbr.rel (%p1753) target = $region72
        $region71: #{tpu_custom_call.1} parent=67 // pred_region
          %s1756 = sand.u32 %s227, 1
          %s1757 = scalar_lea.sflag [#allocation4], %s1756
          %s1758 = sand.u32 %s227, 1
          %s1759 = smul.addr %s1758, 728
          %s1760 = scalar_lea.vmem [#allocation5], %s1759
          %1762 = dma.done %s1757, 11648
        $region72: #{tpu_custom_call.1} parent=67 // pred_fallthru
          _
      $region68: #{tpu_custom_call.1} parent=5 // pred_fallthru
        _
    $region6: #{tpu_custom_call.1} parent=1 // loop_footer
      %s23 = sadd.s32 1, %s19
    $region7: #{tpu_custom_call.1} parent=1 // loop_footer_branch
      %18 = sbr.rel target = $region3
    $region8: #{tpu_custom_call.1} parent=1 // loop_exit
      _
    %1763 = vsyncpa [#allocation3], 1
    %s1764 = scalar_lea.sflag [#allocation3], 1
    %1765 = vsyncpa %s1764, 1
    %1766 = vsyncpa [#allocation4], 1
    %s1767 = scalar_lea.sflag [#allocation4], 1
    %1768 = vsyncpa %s1767, 1

</llo_original>
